<compile_context>
chip_gen: v7x
topology: tpu7x:2x2x1
jax: 0.10.0
libtpu: 0.0.40
codegen_flags: <defaults>
</compile_context>

<pallas_src>
import functools
from typing import NamedTuple

import numpy as np

import jax
import jax.numpy as jnp
from jax.experimental import pallas as pl
from jax.experimental.pallas import tpu as pltpu


def _round_up(v, m):
    return ((v + m - 1) // m) * m


def _vmem_budget_bytes():
    """Generation-aware scoped-VMEM budget (2/3 of physical, capped)."""
    phys = 64 << 20  # conservative default (v7x physical VMEM per TC)
    try:
        info = pltpu.get_tpu_info()
        cap = getattr(info, "vmem_capacity_bytes", None)
        if cap:
            phys = int(cap)
    except Exception:
        pass
    return min(int(phys * 2 // 3), 100 << 20)


class GraphPlan(NamedTuple):
    n: int
    d: int
    n_pad: int
    d_pad: int
    tm: int
    tk: int
    max_nnz: int
    nnz_blocks: int
    x_resident: bool
    vmem_limit: int


# ----------------------------- Pallas kernel ------------------------------ #
def _agg_kernel(cnt_ref, cols_ref, a_ref, x_ref, accp_ref,
                o32_ref, obf_ref, acc_ref, *, tk, max_nnz, x_resident):
    """One LightGCNAgg hop: block-sparse tile of A @ X with f32 accumulation.

    cnt_ref  : SMEM int32[nbm]            #nonzero A blocks per row block.
    cols_ref : SMEM int32[nbm*max_nnz]    nonzero block-column indices (padded
                                          slots repeat the last valid index).
    a_ref    : bf16 (tm, tk) tile of A (block column chosen by cols_ref).
    x_ref    : bf16 (n_pad, d_pad) resident X        (x_resident=True)
               bf16 (tk, d_pad)    streamed X tile   (x_resident=False)
    accp_ref : f32 (tm, d_pad) previous layer-sum tile.
    o32_ref  : f32 (tm, d_pad) new layer-sum tile   = accp + A@x.
    obf_ref  : bf16 (tm, d_pad) next hop input tile = bf16(A@x).
    acc_ref  : f32 (tm, d_pad) VMEM scratch accumulator.
    """
    i = pl.program_id(0)
    kk = pl.program_id(1)

    @pl.when(kk == 0)
    def _():
        acc_ref[...] = jnp.zeros_like(acc_ref)

    # Only real (nonzero) A blocks do MXU work; padded k-slots are gated off
    # and their A-tile DMA is dedup'd (same block index as the previous step).
    @pl.when(kk < cnt_ref[i])
    def _():
        if x_resident:
            kb = cols_ref[i * max_nnz + kk]
            start = pl.multiple_of(kb * tk, tk)
            x_blk = x_ref[pl.ds(start, tk), :]
        else:
            x_blk = x_ref[...]
        acc_ref[...] += jnp.dot(a_ref[...], x_blk,
                                preferred_element_type=jnp.float32)

    @pl.when(kk == pl.num_programs(1) - 1)
    def _():
        hop_out = acc_ref[...]
        o32_ref[...] = accp_ref[...] + hop_out          # running layer sum
        obf_ref[...] = hop_out.astype(obf_ref.dtype)    # next hop's input


def _agg_pallas_call(plan: GraphPlan):
    """(counts, cols, A_bf16, X_bf16, acc_prev_f32) -> (acc_new_f32, X_next_bf16)."""
    tm, tk, n_pad, d_pad = plan.tm, plan.tk, plan.n_pad, plan.d_pad
    max_nnz = plan.max_nnz
    nbm = n_pad // tm
    grid = (nbm, max_nnz)

    if plan.x_resident:
        # Full X block, constant index -> DMA'd once, stays VMEM-resident.
        # TODO(synk): pipeline_mode=pl.Buffered(1) would halve its footprint;
        # kept at default buffering for compile safety.
        x_spec = pl.BlockSpec((n_pad, d_pad), lambda i, kk, cnt, cols: (0, 0))
    else:
        x_spec = pl.BlockSpec(
            (tk, d_pad), lambda i, kk, cnt, cols: (cols[i * max_nnz + kk], 0))

    kernel = functools.partial(_agg_kernel, tk=tk, max_nnz=max_nnz,
                               x_resident=plan.x_resident)

    flops = 2 * plan.nnz_blocks * tm * tk * d_pad
    bytes_accessed = (plan.nnz_blocks * tm * tk * 2           # A (nonzero blocks)
                      + (n_pad * d_pad * 2 if plan.x_resident
                         else plan.nnz_blocks * tk * d_pad * 2)
                      + n_pad * d_pad * 4                      # acc_prev in
                      + n_pad * d_pad * (4 + 2))               # f32 + bf16 out

    return pl.pallas_call(
        kernel,
        out_shape=(jax.ShapeDtypeStruct((n_pad, d_pad), jnp.float32),
                   jax.ShapeDtypeStruct((n_pad, d_pad), jnp.bfloat16)),
        grid_spec=pltpu.PrefetchScalarGridSpec(
            num_scalar_prefetch=2,
            grid=grid,
            in_specs=[
                # A tile: data-dependent block-column (block-sparse streaming).
                pl.BlockSpec(
                    (tm, tk),
                    lambda i, kk, cnt, cols: (i, cols[i * max_nnz + kk])),
                x_spec,
                # Previous layer sum: one tile per row block.
                pl.BlockSpec((tm, d_pad), lambda i, kk, cnt, cols: (i, 0)),
            ],
            out_specs=[
                pl.BlockSpec((tm, d_pad), lambda i, kk, cnt, cols: (i, 0)),
                pl.BlockSpec((tm, d_pad), lambda i, kk, cnt, cols: (i, 0)),
            ],
            scratch_shapes=[pltpu.VMEM((tm, d_pad), jnp.float32)],
        ),
        compiler_params=pltpu.CompilerParams(
            dimension_semantics=("parallel", "arbitrary"),
            vmem_limit_bytes=plan.vmem_limit),
        cost_estimate=pl.CostEstimate(
            flops=flops, transcendentals=0, bytes_accessed=bytes_accessed),
    )


# --------------------------- One-time graph prep --------------------------- #
def prepare_graph(g_laplace, d, *, max_tile=1024):
    """Cast/pad A and build block-sparsity metadata ONCE per graph.

    g_laplace is constant across training steps; doing this per forward would
    re-read ~8*n^2 bytes every step.
    """
    n = g_laplace.shape[0]
    assert g_laplace.shape == (n, n)
    d_pad = _round_up(d, 128)
    n128 = _round_up(n, 128)

    tm = min(max_tile, n128)
    # v7x has 2 TensorCores; keep >= 2 blocks on the 'parallel' row axis.
    if n128 // tm < 2 and n128 >= 256:
        tm = _round_up(n128 // 2, 128)
    tk = tm
    n_pad = _round_up(n, tm)

    # bf16 cast + zero pad (padding stays all-zero -> semantics preserved).
    # TODO(synk): torch.sparse.mm uses a sparse CSR/COO A; here A is densified
    # and block-level sparsity recovers the DMA/compute skip.
    a = g_laplace.astype(jnp.bfloat16)
    if n_pad != n:
        a = jnp.pad(a, ((0, n_pad - n), (0, n_pad - n)))

    # Block-sparsity metadata (host side, once per graph).
    nbm = n_pad // tm
    nbk = n_pad // tk
    mask = np.asarray(jnp.any(a.reshape(nbm, tm, nbk, tk) != 0, axis=(1, 3)))
    counts = mask.sum(axis=1).astype(np.int32)
    nnz_blocks = int(counts.sum())
    max_nnz = max(int(counts.max()), 1)
    cols = np.zeros((nbm, max_nnz), dtype=np.int32)
    for i in range(nbm):
        idx = np.nonzero(mask[i])[0].astype(np.int32)
        if idx.size:
            cols[i, :idx.size] = idx
            cols[i, idx.size:] = idx[-1]  # repeat last valid -> DMA dedup

    # VMEM budget & resident-X decision (budget-aware, generation-aware).
    vmem_limit = _vmem_budget_bytes()
    fixed = (2 * tm * tk * 2          # A tile, double-buffered, bf16
             + 2 * tm * d_pad * 4     # acc_prev input, f32
             + 2 * tm * d_pad * 4     # f32 output
             + 2 * tm * d_pad * 2     # bf16 output
             + tm * d_pad * 4)        # f32 accumulator scratch
    x_res_bytes = 2 * n_pad * d_pad * 2
    x_stream_bytes = 2 * tk * d_pad * 2
    x_resident = fixed + x_res_bytes <= int(0.8 * vmem_limit)
    if not x_resident:
        assert fixed + x_stream_bytes <= vmem_limit, "tiles exceed VMEM budget"

    plan = GraphPlan(n=n, d=d, n_pad=n_pad, d_pad=d_pad, tm=tm, tk=tk,
                     max_nnz=max_nnz, nnz_blocks=nnz_blocks,
                     x_resident=x_resident, vmem_limit=vmem_limit)
    return plan, a, jnp.asarray(counts), jnp.asarray(cols.reshape(-1))


# ----------------------------- LightGCN model ----------------------------- #
def xavier_normal(key, shape):
    fan_in, fan_out = shape[0], shape[1]
    std = (2.0 / (fan_in + fan_out)) ** 0.5
    return std * jax.random.normal(key, shape, dtype=jnp.float32)


def make_lightgcn_forward(plan: GraphPlan, num_users, hop):
    """Build a jitted forward closing over the (static) graph plan."""
    agg = _agg_pallas_call(plan)
    n, d, n_pad, d_pad = plan.n, plan.d, plan.n_pad, plan.d_pad

    @jax.jit
    def forward(a_prep, counts, cols, user_emb, item_emb, user_ids, item_ids):
        all_emb = jnp.concatenate([user_emb, item_emb], axis=0)  # [n, d] f32
        x0 = jnp.pad(all_emb.astype(jnp.float32),
                     ((0, n_pad - n), (0, d_pad - d)))
        acc = x0                              # f32 running layer sum
        cur_bf = x0.astype(jnp.bfloat16)      # current hop input (bf16)
        for _ in range(hop):
            # Pallas kernel: acc <- acc + A@cur ; cur <- bf16(A@cur)
            acc, cur_bf = agg(counts, cols, a_prep, cur_bf, acc)
        light_out = acc[:n, :d] / jnp.float32(hop + 1)  # torch.mean over layers
        all_users = light_out[:num_users]
        all_items = light_out[num_users:]
        # Embedding gather (cheap glue) stays in plain JAX.
        user_embs = jnp.take(all_users, user_ids, axis=0)
        item_embs = jnp.take(all_items, item_ids, axis=0)
        return user_embs, item_embs

    return forward


# --------------------------------- main ------------------------------------ #
if __name__ == "__main__":
    num_users = 128
    num_items = 128
    dim = 128
    hop = 2
    n = num_users + num_items

    key = jax.random.PRNGKey(0)
    k_u, k_i, k_a, k_uid, k_iid = jax.random.split(key, 5)

    # Deterministic parameter init (xavier_normal_, as in __init__).
    user_emb = xavier_normal(k_u, (num_users, dim))
    item_emb = xavier_normal(k_i, (num_items, dim))

    # Synthetic normalized adjacency standing in for g_laplace, with an
    # all-zero 128x128 block so the block-sparse skip path is exercised.
    a_raw = jax.random.uniform(k_a, (n, n), dtype=jnp.float32)
    a_raw = (a_raw > 0.9).astype(jnp.float32)       # sparse-ish pattern
    a_raw = a_raw.at[:128, 128:].set(0.0)           # zero block (row 0, col 1)
    deg = jnp.maximum(a_raw.sum(axis=1, keepdims=True), 1.0)
    g_laplace = a_raw / deg                         # row-normalized

    user_ids = jax.random.randint(k_uid, (8,), 0, num_users)
    item_ids = jax.random.randint(k_iid, (8,), 0, num_items)

    # One-time graph prep (cached across training steps).
    plan, a_prep, counts, cols = prepare_graph(g_laplace, dim)
    forward = make_lightgcn_forward(plan, num_users, hop)

    user_out, item_out = forward(a_prep, counts, cols,
                                 user_emb, item_emb, user_ids, item_ids)
    jax.block_until_ready((user_out, item_out))

    # ----------------------------- Reference checks ----------------------- #
    all_emb = jnp.concatenate([user_emb, item_emb], axis=0)

    # (a) Exact-semantics reference: same bf16 inputs, f32 accumulation.
    a_bf = g_laplace.astype(jnp.bfloat16)
    cur = all_emb
    acc = all_emb
    for _ in range(hop):
        cur = jnp.dot(a_bf, cur.astype(jnp.bfloat16),
                      preferred_element_type=jnp.float32)
        acc = acc + cur
    light_bf = acc / jnp.float32(hop + 1)
    ref_u = light_bf[:num_users][user_ids]
    ref_i = light_bf[num_users:][item_ids]
    assert jnp.allclose(user_out, ref_u, atol=1e-4, rtol=1e-4), "user mismatch"
    assert jnp.allclose(item_out, ref_i, atol=1e-4, rtol=1e-4), "item mismatch"

    # (b) Full-f32 reference of the torch module (bf16 inputs -> loose tol).
    embs = [all_emb]
    for _ in range(hop):
        embs.append(g_laplace @ embs[-1])
    light_f32 = jnp.mean(jnp.stack(embs, axis=1), axis=1)
    assert jnp.allclose(user_out, light_f32[:num_users][user_ids],
                        atol=5e-3), "user f32 drift"
    assert jnp.allclose(item_out, light_f32[num_users:][item_ids],
                        atol=5e-3), "item f32 drift"

    print("KERNEL_OK")
</pallas_src>

<mosaic_0001>
module attributes {stable_mosaic.version = 11 : i64} {
  func.func @_agg_kernel(%arg0: i32, %arg1: i32, %arg2: memref<2xi32, #tpu.memory_space<smem>>, %arg3: memref<4xi32, #tpu.memory_space<smem>>, %arg4: memref<128x128xbf16, #tpu.memory_space<vmem>>, %arg5: memref<256x128xbf16, #tpu.memory_space<vmem>>, %arg6: memref<128x128xf32, #tpu.memory_space<vmem>>, %arg7: memref<128x128xf32, #tpu.memory_space<vmem>>, %arg8: memref<128x128xbf16, #tpu.memory_space<vmem>>, %arg9: memref<128x128xf32, #tpu.memory_space<vmem>>) attributes {dimension_semantics = [#tpu.dimension_semantics<parallel>, #tpu.dimension_semantics<arbitrary>], iteration_bounds = array<i64: 2, 2>, scalar_prefetch = 2 : i64, scratch_operands = 1 : i64, tpu.core_type = #tpu.core_type<tc>, window_params = [{transform_indices = @transform_0, window_bounds = array<i64: 128, 128>}, {pipeline_mode = #tpu.pipeline_mode<synchronous>, transform_indices = @transform_1, window_bounds = array<i64: 256, 128>}, {transform_indices = @transform_2, window_bounds = array<i64: 128, 128>}, {transform_indices = @transform_3, window_bounds = array<i64: 128, 128>}, {transform_indices = @transform_4, window_bounds = array<i64: 128, 128>}]} {
    %c0_i32 = arith.constant 0 : i32
    %0 = arith.cmpi eq, %arg1, %c0_i32 : i32
    %1 = arith.extui %0 : i1 to i32
    %c0_i32_0 = arith.constant 0 : i32
    %2 = arith.cmpi ne, %1, %c0_i32_0 : i32
    scf.if %2 {
      %cst = arith.constant 0.000000e+00 : f32
      %11 = vector.broadcast %cst : f32 to vector<128x128xf32>
      %c0 = arith.constant 0 : index
      %c0_3 = arith.constant 0 : index
      %12 = vector.load %arg9[%c0, %c0_3] : memref<128x128xf32, #tpu.memory_space<vmem>>, vector<128x128xf32>
      tpu.vector_store %arg9[%c0, %c0_3], %11 {strides = array<i32>} : memref<128x128xf32, #tpu.memory_space<vmem>>, vector<128x128xf32>,
    } else {
    }
    %3 = arith.index_cast %arg0 : i32 to index
    %4 = memref.load %arg2[%3] : memref<2xi32, #tpu.memory_space<smem>>
    %5 = arith.cmpi slt, %arg1, %4 : i32
    %6 = arith.extui %5 : i1 to i32
    %c0_i32_1 = arith.constant 0 : i32
    %7 = arith.cmpi ne, %6, %c0_i32_1 : i32
    scf.if %7 {
      %c2_i32 = arith.constant 2 : i32
      %11 = arith.muli %arg0, %c2_i32 : i32
      %12 = arith.addi %11, %arg1 : i32
      %13 = arith.index_cast %12 : i32 to index
      %14 = memref.load %arg3[%13] : memref<4xi32, #tpu.memory_space<smem>>
      %c128_i32 = arith.constant 128 : i32
      %15 = arith.muli %14, %c128_i32 : i32
      %16 = tpu.assume_multiple %15, 128 : i32
      %17 = arith.index_cast %16 : i32 to index
      %c0 = arith.constant 0 : index
      %18 = vector.load %arg5[%17, %c0] : memref<256x128xbf16, #tpu.memory_space<vmem>>, vector<128x128xbf16>
      %c0_3 = arith.constant 0 : index
      %c0_4 = arith.constant 0 : index
      %19 = vector.load %arg9[%c0_3, %c0_4] : memref<128x128xf32, #tpu.memory_space<vmem>>, vector<128x128xf32>
      %c0_5 = arith.constant 0 : index
      %c0_6 = arith.constant 0 : index
      %20 = vector.load %arg4[%c0_5, %c0_6] : memref<128x128xbf16, #tpu.memory_space<vmem>>, vector<128x128xbf16>
      %cst = arith.constant dense<0.000000e+00> : vector<128x128xf32>
      %21 = tpu.matmul %20, %18, %cst {dimension_numbers = #tpu.dot_dimension_numbers<[1], [0], [0], [1], [0, 0, 1, 1], [], []>} : vector<128x128xbf16>, vector<128x128xbf16>, vector<128x128xf32> -> vector<128x128xf32>
      %22 = arith.addf %19, %21 : vector<128x128xf32>
      %c0_7 = arith.constant 0 : index
      %c0_8 = arith.constant 0 : index
      %23 = vector.load %arg9[%c0_7, %c0_8] : memref<128x128xf32, #tpu.memory_space<vmem>>, vector<128x128xf32>
      tpu.vector_store %arg9[%c0_7, %c0_8], %22 {strides = array<i32>} : memref<128x128xf32, #tpu.memory_space<vmem>>, vector<128x128xf32>,
    } else {
    }
    %c1_i32 = arith.constant 1 : i32
    %8 = arith.cmpi eq, %arg1, %c1_i32 : i32
    %9 = arith.extui %8 : i1 to i32
    %c0_i32_2 = arith.constant 0 : i32
    %10 = arith.cmpi ne, %9, %c0_i32_2 : i32
    scf.if %10 {
      %c0 = arith.constant 0 : index
      %c0_3 = arith.constant 0 : index
      %11 = vector.load %arg9[%c0, %c0_3] : memref<128x128xf32, #tpu.memory_space<vmem>>, vector<128x128xf32>
      %c0_4 = arith.constant 0 : index
      %c0_5 = arith.constant 0 : index
      %12 = vector.load %arg6[%c0_4, %c0_5] : memref<128x128xf32, #tpu.memory_space<vmem>>, vector<128x128xf32>
      %13 = arith.addf %12, %11 : vector<128x128xf32>
      %c0_6 = arith.constant 0 : index
      %c0_7 = arith.constant 0 : index
      %14 = vector.load %arg7[%c0_6, %c0_7] : memref<128x128xf32, #tpu.memory_space<vmem>>, vector<128x128xf32>
      tpu.vector_store %arg7[%c0_6, %c0_7], %13 {strides = array<i32>} : memref<128x128xf32, #tpu.memory_space<vmem>>, vector<128x128xf32>,
      %15 = arith.truncf %11 : vector<128x128xf32> to vector<128x128xbf16>
      %c0_8 = arith.constant 0 : index
      %c0_9 = arith.constant 0 : index
      %16 = vector.load %arg8[%c0_8, %c0_9] : memref<128x128xbf16, #tpu.memory_space<vmem>>, vector<128x128xbf16>
      tpu.vector_store %arg8[%c0_8, %c0_9], %15 {strides = array<i32>} : memref<128x128xbf16, #tpu.memory_space<vmem>>, vector<128x128xbf16>,
    } else {
    }
    return
  }
  func.func @transform_0(%arg0: i32, %arg1: i32, %arg2: memref<2xi32, #tpu.memory_space<smem>>, %arg3: memref<4xi32, #tpu.memory_space<smem>>) -> (i32, i32) {
    %c2_i32 = arith.constant 2 : i32
    %0 = arith.muli %arg0, %c2_i32 : i32
    %1 = arith.addi %0, %arg1 : i32
    %2 = arith.index_cast %1 : i32 to index
    %3 = memref.load %arg3[%2] : memref<4xi32, #tpu.memory_space<smem>>
    %c0_i32 = arith.constant 0 : i32
    return %arg0, %3 : i32, i32
  }
  func.func @transform_1(%arg0: i32, %arg1: i32, %arg2: memref<2xi32, #tpu.memory_space<smem>>, %arg3: memref<4xi32, #tpu.memory_space<smem>>) -> (i32, i32) {
    %c0_i32 = arith.constant 0 : i32
    %c0_i32_0 = arith.constant 0 : i32
    %c0_i32_1 = arith.constant 0 : i32
    return %c0_i32, %c0_i32_0 : i32, i32
  }
  func.func @transform_2(%arg0: i32, %arg1: i32, %arg2: memref<2xi32, #tpu.memory_space<smem>>, %arg3: memref<4xi32, #tpu.memory_space<smem>>) -> (i32, i32) {
    %c0_i32 = arith.constant 0 : i32
    %c0_i32_0 = arith.constant 0 : i32
    return %arg0, %c0_i32 : i32, i32
  }
  func.func @transform_3(%arg0: i32, %arg1: i32, %arg2: memref<2xi32, #tpu.memory_space<smem>>, %arg3: memref<4xi32, #tpu.memory_space<smem>>) -> (i32, i32) {
    %c0_i32 = arith.constant 0 : i32
    %c0_i32_0 = arith.constant 0 : i32
    return %arg0, %c0_i32 : i32, i32
  }
  func.func @transform_4(%arg0: i32, %arg1: i32, %arg2: memref<2xi32, #tpu.memory_space<smem>>, %arg3: memref<4xi32, #tpu.memory_space<smem>>) -> (i32, i32) {
    %c0_i32 = arith.constant 0 : i32
    %c0_i32_0 = arith.constant 0 : i32
    return %arg0, %c0_i32 : i32, i32
  }
}

module attributes {stable_mosaic.version = 11 : i64} {
  func.func @_agg_kernel(%arg0: i32, %arg1: i32, %arg2: memref<2xi32, #tpu.memory_space<smem>>, %arg3: memref<4xi32, #tpu.memory_space<smem>>, %arg4: memref<128x128xbf16, #tpu.memory_space<vmem>>, %arg5: memref<256x128xbf16, #tpu.memory_space<vmem>>, %arg6: memref<128x128xf32, #tpu.memory_space<vmem>>, %arg7: memref<128x128xf32, #tpu.memory_space<vmem>>, %arg8: memref<128x128xbf16, #tpu.memory_space<vmem>>, %arg9: memref<128x128xf32, #tpu.memory_space<vmem>>) attributes {dimension_semantics = [#tpu.dimension_semantics<parallel>, #tpu.dimension_semantics<arbitrary>], iteration_bounds = array<i64: 2, 2>, scalar_prefetch = 2 : i64, scratch_operands = 1 : i64, tpu.core_type = #tpu.core_type<tc>, window_params = [{transform_indices = @transform_0, window_bounds = array<i64: 128, 128>}, {pipeline_mode = #tpu.pipeline_mode<synchronous>, transform_indices = @transform_1, window_bounds = array<i64: 256, 128>}, {transform_indices = @transform_2, window_bounds = array<i64: 128, 128>}, {transform_indices = @transform_3, window_bounds = array<i64: 128, 128>}, {transform_indices = @transform_4, window_bounds = array<i64: 128, 128>}]} {
    %c0_i32 = arith.constant 0 : i32
    %0 = arith.cmpi eq, %arg1, %c0_i32 : i32
    %1 = arith.extui %0 : i1 to i32
    %c0_i32_0 = arith.constant 0 : i32
    %2 = arith.cmpi ne, %1, %c0_i32_0 : i32
    scf.if %2 {
      %cst = arith.constant 0.000000e+00 : f32
      %11 = vector.broadcast %cst : f32 to vector<128x128xf32>
      %c0 = arith.constant 0 : index
      %c0_3 = arith.constant 0 : index
      %12 = vector.load %arg9[%c0, %c0_3] : memref<128x128xf32, #tpu.memory_space<vmem>>, vector<128x128xf32>
      tpu.vector_store %arg9[%c0, %c0_3], %11 {strides = array<i32>} : memref<128x128xf32, #tpu.memory_space<vmem>>, vector<128x128xf32>,
    } else {
    }
    %3 = arith.index_cast %arg0 : i32 to index
    %4 = memref.load %arg2[%3] : memref<2xi32, #tpu.memory_space<smem>>
    %5 = arith.cmpi slt, %arg1, %4 : i32
    %6 = arith.extui %5 : i1 to i32
    %c0_i32_1 = arith.constant 0 : i32
    %7 = arith.cmpi ne, %6, %c0_i32_1 : i32
    scf.if %7 {
      %c2_i32 = arith.constant 2 : i32
      %11 = arith.muli %arg0, %c2_i32 : i32
      %12 = arith.addi %11, %arg1 : i32
      %13 = arith.index_cast %12 : i32 to index
      %14 = memref.load %arg3[%13] : memref<4xi32, #tpu.memory_space<smem>>
      %c128_i32 = arith.constant 128 : i32
      %15 = arith.muli %14, %c128_i32 : i32
      %16 = tpu.assume_multiple %15, 128 : i32
      %17 = arith.index_cast %16 : i32 to index
      %c0 = arith.constant 0 : index
      %18 = vector.load %arg5[%17, %c0] : memref<256x128xbf16, #tpu.memory_space<vmem>>, vector<128x128xbf16>
      %c0_3 = arith.constant 0 : index
      %c0_4 = arith.constant 0 : index
      %19 = vector.load %arg9[%c0_3, %c0_4] : memref<128x128xf32, #tpu.memory_space<vmem>>, vector<128x128xf32>
      %c0_5 = arith.constant 0 : index
      %c0_6 = arith.constant 0 : index
      %20 = vector.load %arg4[%c0_5, %c0_6] : memref<128x128xbf16, #tpu.memory_space<vmem>>, vector<128x128xbf16>
      %cst = arith.constant dense<0.000000e+00> : vector<128x128xf32>
      %21 = tpu.matmul %20, %18, %cst {dimension_numbers = #tpu.dot_dimension_numbers<[1], [0], [0], [1], [0, 0, 1, 1], [], []>} : vector<128x128xbf16>, vector<128x128xbf16>, vector<128x128xf32> -> vector<128x128xf32>
      %22 = arith.addf %19, %21 : vector<128x128xf32>
      %c0_7 = arith.constant 0 : index
      %c0_8 = arith.constant 0 : index
      %23 = vector.load %arg9[%c0_7, %c0_8] : memref<128x128xf32, #tpu.memory_space<vmem>>, vector<128x128xf32>
      tpu.vector_store %arg9[%c0_7, %c0_8], %22 {strides = array<i32>} : memref<128x128xf32, #tpu.memory_space<vmem>>, vector<128x128xf32>,
    } else {
    }
    %c1_i32 = arith.constant 1 : i32
    %8 = arith.cmpi eq, %arg1, %c1_i32 : i32
    %9 = arith.extui %8 : i1 to i32
    %c0_i32_2 = arith.constant 0 : i32
    %10 = arith.cmpi ne, %9, %c0_i32_2 : i32
    scf.if %10 {
      %c0 = arith.constant 0 : index
      %c0_3 = arith.constant 0 : index
      %11 = vector.load %arg9[%c0, %c0_3] : memref<128x128xf32, #tpu.memory_space<vmem>>, vector<128x128xf32>
      %c0_4 = arith.constant 0 : index
      %c0_5 = arith.constant 0 : index
      %12 = vector.load %arg6[%c0_4, %c0_5] : memref<128x128xf32, #tpu.memory_space<vmem>>, vector<128x128xf32>
      %13 = arith.addf %12, %11 : vector<128x128xf32>
      %c0_6 = arith.constant 0 : index
      %c0_7 = arith.constant 0 : index
      %14 = vector.load %arg7[%c0_6, %c0_7] : memref<128x128xf32, #tpu.memory_space<vmem>>, vector<128x128xf32>
      tpu.vector_store %arg7[%c0_6, %c0_7], %13 {strides = array<i32>} : memref<128x128xf32, #tpu.memory_space<vmem>>, vector<128x128xf32>,
      %15 = arith.truncf %11 : vector<128x128xf32> to vector<128x128xbf16>
      %c0_8 = arith.constant 0 : index
      %c0_9 = arith.constant 0 : index
      %16 = vector.load %arg8[%c0_8, %c0_9] : memref<128x128xbf16, #tpu.memory_space<vmem>>, vector<128x128xbf16>
      tpu.vector_store %arg8[%c0_8, %c0_9], %15 {strides = array<i32>} : memref<128x128xbf16, #tpu.memory_space<vmem>>, vector<128x128xbf16>,
    } else {
    }
    return
  }
  func.func @transform_0(%arg0: i32, %arg1: i32, %arg2: memref<2xi32, #tpu.memory_space<smem>>, %arg3: memref<4xi32, #tpu.memory_space<smem>>) -> (i32, i32) {
    %c2_i32 = arith.constant 2 : i32
    %0 = arith.muli %arg0, %c2_i32 : i32
    %1 = arith.addi %0, %arg1 : i32
    %2 = arith.index_cast %1 : i32 to index
    %3 = memref.load %arg3[%2] : memref<4xi32, #tpu.memory_space<smem>>
    %c0_i32 = arith.constant 0 : i32
    return %arg0, %3 : i32, i32
  }
  func.func @transform_1(%arg0: i32, %arg1: i32, %arg2: memref<2xi32, #tpu.memory_space<smem>>, %arg3: memref<4xi32, #tpu.memory_space<smem>>) -> (i32, i32) {
    %c0_i32 = arith.constant 0 : i32
    %c0_i32_0 = arith.constant 0 : i32
    %c0_i32_1 = arith.constant 0 : i32
    return %c0_i32, %c0_i32_0 : i32, i32
  }
  func.func @transform_2(%arg0: i32, %arg1: i32, %arg2: memref<2xi32, #tpu.memory_space<smem>>, %arg3: memref<4xi32, #tpu.memory_space<smem>>) -> (i32, i32) {
    %c0_i32 = arith.constant 0 : i32
    %c0_i32_0 = arith.constant 0 : i32
    return %arg0, %c0_i32 : i32, i32
  }
  func.func @transform_3(%arg0: i32, %arg1: i32, %arg2: memref<2xi32, #tpu.memory_space<smem>>, %arg3: memref<4xi32, #tpu.memory_space<smem>>) -> (i32, i32) {
    %c0_i32 = arith.constant 0 : i32
    %c0_i32_0 = arith.constant 0 : i32
    return %arg0, %c0_i32 : i32, i32
  }
  func.func @transform_4(%arg0: i32, %arg1: i32, %arg2: memref<2xi32, #tpu.memory_space<smem>>, %arg3: memref<4xi32, #tpu.memory_space<smem>>) -> (i32, i32) {
    %c0_i32 = arith.constant 0 : i32
    %c0_i32_0 = arith.constant 0 : i32
    return %arg0, %c0_i32 : i32, i32
  }
}

</mosaic_0001>

<llo_original>
// kernel: forward.2
$region0: #{forward.2}
  #allocation0 [shape = 'u32[]', space=smem, size = 0x4, offset = 0x4, fixed_abs, tag = 'smem constant byte address 0x4 - core index']
  #allocation1 [shape = 'u32[144,128]{1,0:T(1,128)}', space=vmem, size = 0x12000, scoped, tag = 'internal scratch']
  #allocation2 [shape = 'f32[128,128]{1,0:T(8,128)}', space=vmem, size = 0x10000, scoped, tag = 'scratch operand']
  #allocation3 [shape = 's32[1]{0}', space=sflag, size = 0x4, scoped, tag = 'scoped memory for forward.2']
  #allocation4 [shape = 'u8[512]{0}', space=smem, size = 0x200, scoped, tag = 'prefetched SMEM operand 0']
  #allocation5 [shape = 'u8[512]{0}', space=smem, size = 0x200, scoped, tag = 'prefetched SMEM operand 1']
  %s0 = inlined_call_operand.vmem [shape: s32[2], index: 0, kind: input, shape index: {}]
  %s1 = inlined_call_operand.vmem [shape: s32[4], index: 1, kind: input, shape index: {}]
  %s2 = inlined_call_operand.vmem [shape: bf16[256,256], index: 2, kind: input, shape index: {}]
  %s3 = inlined_call_operand.vmem [shape: bf16[256,128], index: 3, kind: input, shape index: {}]
  %s4 = inlined_call_operand.vmem [shape: f32[256,128], index: 4, kind: input, shape index: {}]
  %s5 = inlined_call_operand.vmem [shape: f32[256,128], index: 5, kind: output, shape index: {0}]
  %s6 = inlined_call_operand.vmem [shape: bf16[256,128], index: 6, kind: output, shape index: {1}]
  %7 = xla_tuple %s5, %s6
  %s8 = sld [smem:[#allocation0]]
  $region106: #{forward.2} parent=0
    _
  %s10 = ssub.s32 1, %s8
  %s11 = scalar_select 0, %s10, %s8
  %s12 = sshll.u32 %s0, 4
  %s13 = int_to_ptr.vmem [resolvable:$true] %s12
  %15 = dma.vmem_to_smem %s13, 16, [#allocation4], [#allocation3]
  %s16 = sshll.u32 %s1, 4
  %s17 = int_to_ptr.vmem [resolvable:$true] %s16
  %19 = dma.vmem_to_smem %s17, 16, [#allocation5], [#allocation3]
  %20 = dma.done [#allocation3], 32
  %21 = sfence
  $region1: #{forward.2} parent=0
    #allocation6 [shape = 'u8[65536]{0}', space=vmem, size = 0x10000, scoped, tag = 'input window, operand 2']
    loop: start=0, step=1, limit=6
    $region2: #{forward.2} parent=1 // loop_pre_header
      _
    $region3: #{forward.2} parent=1 // loop_header
      %s23 = sphi 0, %s27
      %p24 = scmp.ge.s32.totalorder %s23, 6
      %s30 = sphi 0, %s42
      %s31 = sphi 0, %s38
      %s32 = sphi 0, %s30
      %s33 = sphi 0, %s31
      %s34 = sphi 0, %s32
      %s35 = sphi 0, %s33
      %s53 = sphi 0, %s55
      %s56 = sphi 0, %s53
      %s57 = sphi 0, %s56
      %s73 = sphi 0, %s57
      %s77 = sphi 0, %s77
      %s79 = sphi 0, %s77
      %s80 = sphi 0, %s79
      %s94 = sphi 0, %s80
      %s100 = sphi 0, %s102
      %s103 = sphi 0, %s100
      %s104 = sphi 0, %s103
      %s120 = sphi 0, %s104
      %s126 = sphi 0, %s128
      %s129 = sphi 0, %s126
      %s130 = sphi 0, %s129
      %s146 = sphi 0, %s130
      %s152 = sphi 0, %s154
      %s155 = sphi 0, %s152
      %s156 = sphi 0, %s155
      %s172 = sphi 0, %s156
    $region4: #{forward.2} parent=1 // loop_header_branch
      %26 = sbr.rel (%p24) target = $region8
    $region5: #{forward.2} parent=1 // loop_body
      %s28 = ssub.s32 %s23, 1
      %s29 = ssub.s32 %s23, 2
      %s36 = sadd.s32 1, %s31
      %p37 = scmp.ge.s32.totalorder %s36, 2
      %s38 = scalar_select %p37, 0, %s36
      %s39 = sadd.s32 1, %s30
      %s40 = scalar_select %p37, %s39, %s30
      %p41 = scmp.ge.s32.totalorder %s40, 2
      %s42 = scalar_select %p41, 0, %s40
      %s43 = smul.u32 %s30, 2
      %s44 = sadd.s32 %s43, %s31
      %s45 = sld [smem:[#allocation5 + %s44]]
      %s46 = smul.u32 %s42, 2
      %s47 = sadd.s32 %s46, %s38
      %s48 = sld [smem:[#allocation5 + %s47]]
      %s49 = ssub.s32 %s30, %s42
      %s50 = ssub.s32 %s45, %s48
      %s51 = sor.u32 %s49, %s50
      %p52 = scmp.eq.s32.totalorder %s51, 0
      %s54 = sadd.s32 %s53, 1
      %s55 = scalar_select %p52, %s53, %s54
      %p58 = pneg %p52
      %p59 = scmp.eq.s32.totalorder %s23, 3
      %p60 = por %p58, %p59
      %p61 = scmp.ne.s32.totalorder %s53, %s56
      %p62 = scmp.eq.s32.totalorder %s23, 0
      %p63 = por %p61, %p62
      %p64 = scmp.ne.s32.totalorder %s53, %s56
      %p65 = scmp.eq.s32.totalorder %s28, 3
      %p66 = por %p64, %p65
      %p67 = scmp.ne.s32.totalorder %s56, %s57
      %p68 = scmp.eq.s32.totalorder %s28, 0
      %p69 = por %p67, %p68
      %p70 = scmp.ne.s32.totalorder %s56, %s57
      %p71 = scmp.eq.s32.totalorder %s29, 3
      %p72 = por %p70, %p71
      %p74 = scmp.ne.s32.totalorder %s57, %s73
      %p75 = scmp.eq.s32.totalorder %s29, 0
      %p76 = por %p74, %p75
      %s78 = sadd.s32 %s77, 1
      %p81 = scmp.eq.s32.totalorder %s23, 3
      %p82 = scmp.ne.s32.totalorder %s77, %s79
      %p83 = scmp.eq.s32.totalorder %s23, 0
      %p84 = por %p82, %p83
      %p85 = scmp.ne.s32.totalorder %s77, %s79
      %p86 = scmp.eq.s32.totalorder %s28, 3
      %p87 = por %p85, %p86
      %p88 = scmp.ne.s32.totalorder %s79, %s80
      %p89 = scmp.eq.s32.totalorder %s28, 0
      %p90 = por %p88, %p89
      %p91 = scmp.ne.s32.totalorder %s79, %s80
      %p92 = scmp.eq.s32.totalorder %s29, 3
      %p93 = por %p91, %p92
      %p95 = scmp.ne.s32.totalorder %s80, %s94
      %p96 = scmp.eq.s32.totalorder %s29, 0
      %p97 = por %p95, %p96
      %s98 = ssub.s32 %s30, %s42
      %p99 = scmp.eq.s32.totalorder %s98, 0
      %s101 = sadd.s32 %s100, 1
      %s102 = scalar_select %p99, %s100, %s101
      %p105 = pneg %p99
      %p106 = scmp.eq.s32.totalorder %s23, 3
      %p107 = por %p105, %p106
      %p108 = scmp.ne.s32.totalorder %s100, %s103
      %p109 = scmp.eq.s32.totalorder %s23, 0
      %p110 = por %p108, %p109
      %p111 = scmp.ne.s32.totalorder %s100, %s103
      %p112 = scmp.eq.s32.totalorder %s28, 3
      %p113 = por %p111, %p112
      %p114 = scmp.ne.s32.totalorder %s103, %s104
      %p115 = scmp.eq.s32.totalorder %s28, 0
      %p116 = por %p114, %p115
      %p117 = scmp.ne.s32.totalorder %s103, %s104
      %p118 = scmp.eq.s32.totalorder %s29, 3
      %p119 = por %p117, %p118
      %p121 = scmp.ne.s32.totalorder %s104, %s120
      %p122 = scmp.eq.s32.totalorder %s29, 0
      %p123 = por %p121, %p122
      %s124 = ssub.s32 %s30, %s42
      %p125 = scmp.eq.s32.totalorder %s124, 0
      %s127 = sadd.s32 %s126, 1
      %s128 = scalar_select %p125, %s126, %s127
      %p131 = pneg %p125
      %p132 = scmp.eq.s32.totalorder %s23, 3
      %p133 = por %p131, %p132
      %p134 = scmp.ne.s32.totalorder %s126, %s129
      %p135 = scmp.eq.s32.totalorder %s23, 0
      %p136 = por %p134, %p135
      %p137 = scmp.ne.s32.totalorder %s126, %s129
      %p138 = scmp.eq.s32.totalorder %s28, 3
      %p139 = por %p137, %p138
      %p140 = scmp.ne.s32.totalorder %s129, %s130
      %p141 = scmp.eq.s32.totalorder %s28, 0
      %p142 = por %p140, %p141
      %p143 = scmp.ne.s32.totalorder %s129, %s130
      %p144 = scmp.eq.s32.totalorder %s29, 3
      %p145 = por %p143, %p144
      %p147 = scmp.ne.s32.totalorder %s130, %s146
      %p148 = scmp.eq.s32.totalorder %s29, 0
      %p149 = por %p147, %p148
      %s150 = ssub.s32 %s30, %s42
      %p151 = scmp.eq.s32.totalorder %s150, 0
      %s153 = sadd.s32 %s152, 1
      %s154 = scalar_select %p151, %s152, %s153
      %p157 = pneg %p151
      %p158 = scmp.eq.s32.totalorder %s23, 3
      %p159 = por %p157, %p158
      %p160 = scmp.ne.s32.totalorder %s152, %s155
      %p161 = scmp.eq.s32.totalorder %s23, 0
      %p162 = por %p160, %p161
      %p163 = scmp.ne.s32.totalorder %s152, %s155
      %p164 = scmp.eq.s32.totalorder %s28, 3
      %p165 = por %p163, %p164
      %p166 = scmp.ne.s32.totalorder %s155, %s156
      %p167 = scmp.eq.s32.totalorder %s28, 0
      %p168 = por %p166, %p167
      %p169 = scmp.ne.s32.totalorder %s155, %s156
      %p170 = scmp.eq.s32.totalorder %s29, 3
      %p171 = por %p169, %p170
      %p173 = scmp.ne.s32.totalorder %s156, %s172
      %p174 = scmp.eq.s32.totalorder %s29, 0
      %p175 = por %p173, %p174
      %p176 = scmp.le.s32.totalorder 1, %s23
      %p177 = scmp.lt.s32.totalorder %s23, 5
      %p178 = pnand %p176, %p177
      %p179 = pneg %p178
      // Predicated region
      $region9: #{forward.2} parent=5 // pred_check
        _
      $region10: #{forward.2} parent=5 // pred_check_branch
        %181 = sbr.rel (%p178) target = $region12
      $region11: #{forward.2} parent=5 // pred_region
        %s182 = ssub.s32 %s23, 1
        // Predicated region
        $region13: #{forward.2} parent=11 // pred_check
          %p183 = pneg %p90
        $region14: #{forward.2} parent=11 // pred_check_branch
          %185 = sbr.rel (%p183) target = $region16
        $region15: #{forward.2} parent=11 // pred_region
          _
        $region16: #{forward.2} parent=11 // pred_fallthru
          _
      $region12: #{forward.2} parent=5 // pred_fallthru
        _
      %p186 = scmp.lt.s32.totalorder %s23, 4
      // Predicated region
      $region17: #{forward.2} parent=5 // pred_check
        %p187 = pneg %p186
      $region18: #{forward.2} parent=5 // pred_check_branch
        %189 = sbr.rel (%p187) target = $region20
      $region19: #{forward.2} parent=5 // pred_region
        // Predicated region
        $region21: #{forward.2} parent=19 // pred_check
          %p190 = pneg %p63
        $region22: #{forward.2} parent=19 // pred_check_branch
          %192 = sbr.rel (%p190) target = $region24
        $region23: #{forward.2} parent=19 // pred_region
          %s193 = sand.u32 %s53, 1
          %s194 = sand.u32 %s53, 1
          %s195 = smul.addr %s194, 64
          %s196 = scalar_lea.vmem [#allocation6], %s195
          %s197 = smul.u32 %s30, 2
          %s198 = sadd.s32 %s197, %s31
          %s199 = sld [smem:[#allocation5 + %s198]]
          %s200 = smul.u32 16, %s30
          %s201 = smul.addr %s200, 2
          %s202 = sadd.s32 %s199, %s201
          %s203 = smul.addr %s202, 4
          %s204 = scalar_lea.vmem %s2, %s203
          // Predicated region
          $region25: #{forward.2} parent=23 // pred_check
            _
          $region26: #{forward.2} parent=23 // pred_check_branch
            %206 = sbr.rel (0) target = $region28
          $region27: #{forward.2} parent=23 // pred_region
            // Predicated region
            $region29: #{forward.2} parent=27 // pred_check
              _
            $region30: #{forward.2} parent=27 // pred_check_branch
              %208 = sbr.rel target = $region32
            $region31: #{forward.2} parent=27 // pred_region
              // Predicated region
              $region44: #{forward.2} parent=31 // pred_check
                _
              $region45: #{forward.2} parent=31 // pred_check_branch
                %253 = sbr.rel (0) target = $region47
              $region46: #{forward.2} parent=31 // pred_region
                loop: start=0, step=1, limit=1
                $region48: #{forward.2} parent=46 // loop_pre_header
                  _
                $region49: #{forward.2} parent=46 // loop_header
                  %s255 = sphi 0, %s259
                  %p256 = scmp.ge.s32.totalorder %s255, 1
                  %s260 = sphi %s204, %s204
                  %s261 = sphi %s196, %s196
                $region50: #{forward.2} parent=46 // loop_header_branch
                  %258 = sbr.rel (%p256) target = $region54
                $region51: #{forward.2} parent=46 // loop_body
                  _
                $region52: #{forward.2} parent=46 // loop_footer
                  %s259 = sadd.s32 1, %s255
                $region53: #{forward.2} parent=46 // loop_footer_branch
                  %254 = sbr.rel target = $region49
                $region54: #{forward.2} parent=46 // loop_exit
                  _
                loop: start=0, step=1, limit=1
                $region55: #{forward.2} parent=46 // loop_pre_header
                  _
                $region56: #{forward.2} parent=46 // loop_header
                  %s264 = sphi 0, %s268
                  %p265 = scmp.ge.s32.totalorder %s264, 1
                  %s269 = sphi %s204, %s204
                  %s270 = sphi %s196, %s196
                $region57: #{forward.2} parent=46 // loop_header_branch
                  %267 = sbr.rel (%p265) target = $region61
                $region58: #{forward.2} parent=46 // loop_body
                  %v271 = vld [vmem:[%s269] sm:$0xf]
                  %272 = vst [vmem:[%s270] sm:$0xf] %v271
                  %v273 = vld [vmem:[%s269 + $0x8] sm:$0xf]
                  %274 = vst [vmem:[%s270 + $0x4] sm:$0xf] %v273
                  %v275 = vld [vmem:[%s269 + $0x10] sm:$0xf]
                  %276 = vst [vmem:[%s270 + $0x8] sm:$0xf] %v275
                  %v277 = vld [vmem:[%s269 + $0x18] sm:$0xf]
                  %278 = vst [vmem:[%s270 + $0xc] sm:$0xf] %v277
                  %v279 = vld [vmem:[%s269 + $0x20] sm:$0xf]
                  %280 = vst [vmem:[%s270 + $0x10] sm:$0xf] %v279
                  %v281 = vld [vmem:[%s269 + $0x28] sm:$0xf]
                  %282 = vst [vmem:[%s270 + $0x14] sm:$0xf] %v281
                  %v283 = vld [vmem:[%s269 + $0x30] sm:$0xf]
                  %284 = vst [vmem:[%s270 + $0x18] sm:$0xf] %v283
                  %v285 = vld [vmem:[%s269 + $0x38] sm:$0xf]
                  %286 = vst [vmem:[%s270 + $0x1c] sm:$0xf] %v285
                  %v287 = vld [vmem:[%s269 + $0x40] sm:$0xf]
                  %288 = vst [vmem:[%s270 + $0x20] sm:$0xf] %v287
                  %v289 = vld [vmem:[%s269 + $0x48] sm:$0xf]
                  %290 = vst [vmem:[%s270 + $0x24] sm:$0xf] %v289
                  %v291 = vld [vmem:[%s269 + $0x50] sm:$0xf]
                  %292 = vst [vmem:[%s270 + $0x28] sm:$0xf] %v291
                  %v293 = vld [vmem:[%s269 + $0x58] sm:$0xf]
                  %294 = vst [vmem:[%s270 + $0x2c] sm:$0xf] %v293
                  %v295 = vld [vmem:[%s269 + $0x60] sm:$0xf]
                  %296 = vst [vmem:[%s270 + $0x30] sm:$0xf] %v295
                  %v297 = vld [vmem:[%s269 + $0x68] sm:$0xf]
                  %298 = vst [vmem:[%s270 + $0x34] sm:$0xf] %v297
                  %v299 = vld [vmem:[%s269 + $0x70] sm:$0xf]
                  %300 = vst [vmem:[%s270 + $0x38] sm:$0xf] %v299
                  %v301 = vld [vmem:[%s269 + $0x78] sm:$0xf]
                  %302 = vst [vmem:[%s270 + $0x3c] sm:$0xf] %v301
                $region59: #{forward.2} parent=46 // loop_footer
                  %s268 = sadd.s32 1, %s264
                $region60: #{forward.2} parent=46 // loop_footer_branch
                  %263 = sbr.rel target = $region56
                $region61: #{forward.2} parent=46 // loop_exit
                  _
              $region47: #{forward.2} parent=31 // pred_fallthru
                _
            $region32: #{forward.2} parent=27 // pred_fallthru
              _
            // Predicated region
            $region33: #{forward.2} parent=27 // pred_check
              _
            $region34: #{forward.2} parent=27 // pred_check_branch
              %210 = sbr.rel (0) target = $region36
            $region35: #{forward.2} parent=27 // pred_region
              loop: start=0, step=1, limit=1
              $region37: #{forward.2} parent=35 // loop_pre_header
                _
              $region38: #{forward.2} parent=35 // loop_header
                %s213 = sphi 0, %s217
                %p214 = scmp.ge.s32.totalorder %s213, 1
                %s218 = sphi %s204, %s204
                %s219 = sphi %s196, %s196
              $region39: #{forward.2} parent=35 // loop_header_branch
                %216 = sbr.rel (%p214) target = $region43
              $region40: #{forward.2} parent=35 // loop_body
                %v220 = vld [vmem:[%s218] sm:$0xf]
                %221 = vst [vmem:[%s219] sm:$0xf] %v220
                %v222 = vld [vmem:[%s218 + $0x8] sm:$0xf]
                %223 = vst [vmem:[%s219 + $0x4] sm:$0xf] %v222
                %v224 = vld [vmem:[%s218 + $0x10] sm:$0xf]
                %225 = vst [vmem:[%s219 + $0x8] sm:$0xf] %v224
                %v226 = vld [vmem:[%s218 + $0x18] sm:$0xf]
                %227 = vst [vmem:[%s219 + $0xc] sm:$0xf] %v226
                %v228 = vld [vmem:[%s218 + $0x20] sm:$0xf]
                %229 = vst [vmem:[%s219 + $0x10] sm:$0xf] %v228
                %v230 = vld [vmem:[%s218 + $0x28] sm:$0xf]
                %231 = vst [vmem:[%s219 + $0x14] sm:$0xf] %v230
                %v232 = vld [vmem:[%s218 + $0x30] sm:$0xf]
                %233 = vst [vmem:[%s219 + $0x18] sm:$0xf] %v232
                %v234 = vld [vmem:[%s218 + $0x38] sm:$0xf]
                %235 = vst [vmem:[%s219 + $0x1c] sm:$0xf] %v234
                %v236 = vld [vmem:[%s218 + $0x40] sm:$0xf]
                %237 = vst [vmem:[%s219 + $0x20] sm:$0xf] %v236
                %v238 = vld [vmem:[%s218 + $0x48] sm:$0xf]
                %239 = vst [vmem:[%s219 + $0x24] sm:$0xf] %v238
                %v240 = vld [vmem:[%s218 + $0x50] sm:$0xf]
                %241 = vst [vmem:[%s219 + $0x28] sm:$0xf] %v240
                %v242 = vld [vmem:[%s218 + $0x58] sm:$0xf]
                %243 = vst [vmem:[%s219 + $0x2c] sm:$0xf] %v242
                %v244 = vld [vmem:[%s218 + $0x60] sm:$0xf]
                %245 = vst [vmem:[%s219 + $0x30] sm:$0xf] %v244
                %v246 = vld [vmem:[%s218 + $0x68] sm:$0xf]
                %247 = vst [vmem:[%s219 + $0x34] sm:$0xf] %v246
                %v248 = vld [vmem:[%s218 + $0x70] sm:$0xf]
                %249 = vst [vmem:[%s219 + $0x38] sm:$0xf] %v248
                %v250 = vld [vmem:[%s218 + $0x78] sm:$0xf]
                %251 = vst [vmem:[%s219 + $0x3c] sm:$0xf] %v250
              $region41: #{forward.2} parent=35 // loop_footer
                %s217 = sadd.s32 1, %s213
              $region42: #{forward.2} parent=35 // loop_footer_branch
                %212 = sbr.rel target = $region38
              $region43: #{forward.2} parent=35 // loop_exit
                _
            $region36: #{forward.2} parent=27 // pred_fallthru
              _
          $region28: #{forward.2} parent=23 // pred_fallthru
            _
          %303 = vnop
        $region24: #{forward.2} parent=19 // pred_fallthru
          _
        // Predicated region
        $region62: #{forward.2} parent=19 // pred_check
          %p304 = pneg %p110
        $region63: #{forward.2} parent=19 // pred_check_branch
          %306 = sbr.rel (%p304) target = $region65
        $region64: #{forward.2} parent=19 // pred_region
          %s307 = smul.u32 16, %s30
          %p308 = scmp.lt.s32.totalorder %s307, 31
          %s309 = scalar_select %p308, %s307, 31
          %s310 = smul.addr %s309, 8
          %s311 = scalar_lea.vmem %s4, %s310
          %s312 = smul.u32 16, %s30
        $region65: #{forward.2} parent=19 // pred_fallthru
          _
      $region20: #{forward.2} parent=5 // pred_fallthru
        _
      %p313 = scmp.le.s32.totalorder 1, %s23
      %p314 = scmp.lt.s32.totalorder %s23, 5
      %p315 = pnand %p313, %p314
      %p316 = pneg %p315
      // Predicated region
      $region66: #{forward.2} parent=5 // pred_check
        _
      $region67: #{forward.2} parent=5 // pred_check_branch
        %318 = sbr.rel (%p315) target = $region69
      $region68: #{forward.2} parent=5 // pred_region
        %s319 = ssub.s32 %s23, 1
        %s320 = sand.u32 %s56, 1
        %s321 = sand.u32 %s56, 1
        %s322 = smul.addr %s321, 64
        %s323 = scalar_lea.vmem [#allocation6], %s322
        // Predicated region
        $region70: #{forward.2} parent=68 // pred_check
          %p324 = pneg %p69
        $region71: #{forward.2} parent=68 // pred_check_branch
          %326 = sbr.rel (%p324) target = $region73
        $region72: #{forward.2} parent=68 // pred_region
          _
        $region73: #{forward.2} parent=68 // pred_fallthru
          _
        %s327 = sand.u32 %s56, 1
        %s328 = sand.u32 %s56, 1
        %s329 = smul.addr %s328, 64
        %s330 = scalar_lea.vmem [#allocation6], %s329
        %p331 = pneg %p69
        %p332 = pneg %p66
        %p333 = pneg %p90
        %p334 = pneg %p87
        %s335 = smul.u32 16, %s32
        %p336 = scmp.lt.s32.totalorder %s335, 31
        %s337 = scalar_select %p336, %s335, 31
        %s338 = smul.addr %s337, 8
        %s339 = scalar_lea.vmem %s4, %s338
        %p340 = pneg %p116
        %p341 = pneg %p113
        %p342 = pneg %p142
        %p343 = pneg %p139
        %s344 = smul.u32 16, %s32
        %p345 = scmp.lt.s32.totalorder %s344, 31
        %s346 = scalar_select %p345, %s344, 31
        %s347 = smul.addr %s346, 8
        %s348 = scalar_lea.vmem %s5, %s347
        %p349 = pneg %p168
        %p350 = pneg %p165
        %s351 = smul.u32 16, %s32
        %p352 = scmp.lt.s32.totalorder %s351, 31
        %s353 = scalar_select %p352, %s351, 31
        %s354 = smul.addr %s353, 4
        %s355 = scalar_lea.vmem %s6, %s354
        %s356 = smul.u32 %s32, 2
        %s357 = sadd.s32 %s356, %s33
        %s358 = sld [smem:[#allocation5 + %s357]]
        %s359 = smul.u32 16, %s32
        %s360 = smul.u32 16, %s32
        %p361 = scmp.lt.s32.totalorder %s360, 31
        %s362 = scalar_select %p361, %s360, 31
        %s363 = smul.addr %s362, 8
        %s364 = scalar_lea.vmem %s4, %s363
        %s365 = smul.u32 16, %s32
        %s366 = smul.u32 16, %s32
        %p367 = scmp.lt.s32.totalorder %s366, 31
        %s368 = scalar_select %p367, %s366, 31
        %s369 = smul.addr %s368, 8
        %s370 = scalar_lea.vmem %s5, %s369
        %s371 = smul.u32 16, %s32
        %s372 = smul.u32 16, %s32
        %p373 = scmp.lt.s32.totalorder %s372, 31
        %s374 = scalar_select %p373, %s372, 31
        %s375 = smul.addr %s374, 4
        %s376 = scalar_lea.vmem %s6, %s375
        %s377 = smul.u32 16, %s32
        %p379 = scmp.eq.s32.totalorder %s33, 0
        // Predicated region
        $region74: #{forward.2} parent=68 // pred_check
          %p380 = pneg %p379
        $region75: #{forward.2} parent=68 // pred_check_branch
          %382 = sbr.rel (%p380) target = $region77
        $region76: #{forward.2} parent=68 // pred_region
          %383 = vst [vmem:[#allocation2] sm:$0xff] 0.0
          %384 = vst [vmem:[#allocation2 + $0x8] sm:$0xff] 0.0
          %385 = vst [vmem:[#allocation2 + $0x10] sm:$0xff] 0.0
          %386 = vst [vmem:[#allocation2 + $0x18] sm:$0xff] 0.0
          %387 = vst [vmem:[#allocation2 + $0x20] sm:$0xff] 0.0
          %388 = vst [vmem:[#allocation2 + $0x28] sm:$0xff] 0.0
          %389 = vst [vmem:[#allocation2 + $0x30] sm:$0xff] 0.0
          %390 = vst [vmem:[#allocation2 + $0x38] sm:$0xff] 0.0
          %391 = vst [vmem:[#allocation2 + $0x40] sm:$0xff] 0.0
          %392 = vst [vmem:[#allocation2 + $0x48] sm:$0xff] 0.0
          %393 = vst [vmem:[#allocation2 + $0x50] sm:$0xff] 0.0
          %394 = vst [vmem:[#allocation2 + $0x58] sm:$0xff] 0.0
          %395 = vst [vmem:[#allocation2 + $0x60] sm:$0xff] 0.0
          %396 = vst [vmem:[#allocation2 + $0x68] sm:$0xff] 0.0
          %397 = vst [vmem:[#allocation2 + $0x70] sm:$0xff] 0.0
          %398 = vst [vmem:[#allocation2 + $0x78] sm:$0xff] 0.0
        $region77: #{forward.2} parent=68 // pred_fallthru
          _
        %s399 = sld [smem:[#allocation4 + %s32]]
        %p400 = scmp.lt.s32.totalorder %s33, %s399
        // Predicated region
        $region78: #{forward.2} parent=68 // pred_check
          %p401 = pneg %p400
        $region79: #{forward.2} parent=68 // pred_check_branch
          %403 = sbr.rel (%p401) target = $region81
        $region80: #{forward.2} parent=68 // pred_region
          %s404 = smul.u32 %s32, 2
          %s405 = sadd.s32 %s404, %s33
          %s406 = sld [smem:[#allocation5 + %s405]]
          %s407 = smul.u32 %s406, 128
          %s408 = sshra.s32 %s407, 3
          %s409 = sand.u32 %s407, 7
          %s410 = smul.addr %s408, 4
          %s411 = scalar_lea.vmem %s3, %s410
          %v412 = vld [vmem:[%s411] sm:$0xf]
          %v413 = vld [vmem:[%s411 + $0x4] sm:$0xf]
          %v414 = vld [vmem:[%s411 + $0x8] sm:$0xf]
          %v415 = vld [vmem:[%s411 + $0xc] sm:$0xf]
          %v416 = vld [vmem:[%s411 + $0x10] sm:$0xf]
          %v417 = vld [vmem:[%s411 + $0x14] sm:$0xf]
          %v418 = vld [vmem:[%s411 + $0x18] sm:$0xf]
          %v419 = vld [vmem:[%s411 + $0x1c] sm:$0xf]
          %v420 = vld [vmem:[%s411 + $0x20] sm:$0xf]
          %v421 = vld [vmem:[%s411 + $0x24] sm:$0xf]
          %v422 = vld [vmem:[%s411 + $0x28] sm:$0xf]
          %v423 = vld [vmem:[%s411 + $0x2c] sm:$0xf]
          %v424 = vld [vmem:[%s411 + $0x30] sm:$0xf]
          %v425 = vld [vmem:[%s411 + $0x34] sm:$0xf]
          %v426 = vld [vmem:[%s411 + $0x38] sm:$0xf]
          %v427 = vld [vmem:[%s411 + $0x3c] sm:$0xf]
          %v428 = vld [vmem:[#allocation2] sm:$0xff]
          %v429 = vld [vmem:[#allocation2 + $0x8] sm:$0xff]
          %v430 = vld [vmem:[#allocation2 + $0x10] sm:$0xff]
          %v431 = vld [vmem:[#allocation2 + $0x18] sm:$0xff]
          %v432 = vld [vmem:[#allocation2 + $0x20] sm:$0xff]
          %v433 = vld [vmem:[#allocation2 + $0x28] sm:$0xff]
          %v434 = vld [vmem:[#allocation2 + $0x30] sm:$0xff]
          %v435 = vld [vmem:[#allocation2 + $0x38] sm:$0xff]
          %v436 = vld [vmem:[#allocation2 + $0x40] sm:$0xff]
          %v437 = vld [vmem:[#allocation2 + $0x48] sm:$0xff]
          %v438 = vld [vmem:[#allocation2 + $0x50] sm:$0xff]
          %v439 = vld [vmem:[#allocation2 + $0x58] sm:$0xff]
          %v440 = vld [vmem:[#allocation2 + $0x60] sm:$0xff]
          %v441 = vld [vmem:[#allocation2 + $0x68] sm:$0xff]
          %v442 = vld [vmem:[#allocation2 + $0x70] sm:$0xff]
          %v443 = vld [vmem:[#allocation2 + $0x78] sm:$0xff]
          %v444 = vld [vmem:[%s323] sm:$0xf]
          %v445 = vld [vmem:[%s323 + $0x4] sm:$0xf]
          %v446 = vld [vmem:[%s323 + $0x8] sm:$0xf]
          %v447 = vld [vmem:[%s323 + $0xc] sm:$0xf]
          %v448 = vld [vmem:[%s323 + $0x10] sm:$0xf]
          %v449 = vld [vmem:[%s323 + $0x14] sm:$0xf]
          %v450 = vld [vmem:[%s323 + $0x18] sm:$0xf]
          %v451 = vld [vmem:[%s323 + $0x1c] sm:$0xf]
          %v452 = vld [vmem:[%s323 + $0x20] sm:$0xf]
          %v453 = vld [vmem:[%s323 + $0x24] sm:$0xf]
          %v454 = vld [vmem:[%s323 + $0x28] sm:$0xf]
          %v455 = vld [vmem:[%s323 + $0x2c] sm:$0xf]
          %v456 = vld [vmem:[%s323 + $0x30] sm:$0xf]
          %v457 = vld [vmem:[%s323 + $0x34] sm:$0xf]
          %v458 = vld [vmem:[%s323 + $0x38] sm:$0xf]
          %v459 = vld [vmem:[%s323 + $0x3c] sm:$0xf]
          %v476 = vunpack.c.l.b16 %v444
          %v477 = vunpack.c.l.b16 %v445
          %v478 = vunpack.c.l.b16 %v446
          %v479 = vunpack.c.l.b16 %v447
          %v480 = vunpack.c.l.b16 %v448
          %v481 = vunpack.c.l.b16 %v449
          %v482 = vunpack.c.l.b16 %v450
          %v483 = vunpack.c.l.b16 %v451
          %v484 = vunpack.c.l.b16 %v452
          %v485 = vunpack.c.l.b16 %v453
          %v486 = vunpack.c.l.b16 %v454
          %v487 = vunpack.c.l.b16 %v455
          %v488 = vunpack.c.l.b16 %v456
          %v489 = vunpack.c.l.b16 %v457
          %v490 = vunpack.c.l.b16 %v458
          %v491 = vunpack.c.l.b16 %v459
          %v492 = vpack.c.b16 %v477, %v476
          %v493 = vpack.c.b16 %v479, %v478
          %v494 = vpack.c.b16 %v481, %v480
          %v495 = vpack.c.b16 %v483, %v482
          %v496 = vpack.c.b16 %v485, %v484
          %v497 = vpack.c.b16 %v487, %v486
          %v498 = vpack.c.b16 %v489, %v488
          %v499 = vpack.c.b16 %v491, %v490
          %v524 = vunpack.c.l.b16 %v412
          %v525 = vunpack.c.l.b16 %v413
          %v526 = vunpack.c.l.b16 %v414
          %v527 = vunpack.c.l.b16 %v415
          %v528 = vunpack.c.l.b16 %v416
          %v529 = vunpack.c.l.b16 %v417
          %v530 = vunpack.c.l.b16 %v418
          %v531 = vunpack.c.l.b16 %v419
          %v532 = vunpack.c.l.b16 %v420
          %v533 = vunpack.c.l.b16 %v421
          %v534 = vunpack.c.l.b16 %v422
          %v535 = vunpack.c.l.b16 %v423
          %v536 = vunpack.c.l.b16 %v424
          %v537 = vunpack.c.l.b16 %v425
          %v538 = vunpack.c.l.b16 %v426
          %v539 = vunpack.c.l.b16 %v427
          %v540 = vpack.c.b16 %v525, %v524
          %v541 = vpack.c.b16 %v527, %v526
          %v542 = vpack.c.b16 %v529, %v528
          %v543 = vpack.c.b16 %v531, %v530
          %v544 = vpack.c.b16 %v533, %v532
          %v545 = vpack.c.b16 %v535, %v534
          %v546 = vpack.c.b16 %v537, %v536
          %v547 = vpack.c.b16 %v539, %v538
          %556 = vmatprep.subr.bf16.mxu0 0
          %557 = vmatpush1.bf16.msra.mxu0 %v540
          %558 = vmatprep.subr.bf16.mxu0 0
          %559 = vmatpush1.bf16.msra.mxu0 %v541
          %560 = vmatprep.subr.bf16.mxu0 0
          %561 = vmatpush1.bf16.msra.mxu0 %v542
          %562 = vmatprep.subr.bf16.mxu0 0
          %563 = vmatpush1.bf16.msra.mxu0 %v543
          %564 = vmatprep.subr.bf16.mxu0 0
          %565 = vmatpush1.bf16.msra.mxu0 %v544
          %566 = vmatprep.subr.bf16.mxu0 0
          %567 = vmatpush1.bf16.msra.mxu0 %v545
          %568 = vmatprep.subr.bf16.mxu0 0
          %569 = vmatpush1.bf16.msra.mxu0 %v546
          %570 = vmatprep.subr.bf16.mxu0 0
          %571 = vmatpush1.bf16.msra.mxu0 %v547
          %572 = vmatprep.subr.bf16.mxu0 0
          %573 = vmatpush1.bf16.msra.mxu0 0
          %574 = vmatprep.subr.bf16.mxu0 0
          %575 = vmatpush1.bf16.msra.mxu0 0
          %576 = vmatprep.subr.bf16.mxu0 0
          %577 = vmatpush1.bf16.msra.mxu0 0
          %578 = vmatprep.subr.bf16.mxu0 0
          %579 = vmatpush1.bf16.msra.mxu0 0
          %580 = vmatprep.subr.bf16.mxu0 0
          %581 = vmatpush1.bf16.msra.mxu0 0
          %582 = vmatprep.subr.bf16.mxu0 0
          %583 = vmatpush1.bf16.msra.mxu0 0
          %584 = vmatprep.subr.bf16.mxu0 0
          %585 = vmatpush1.bf16.msra.mxu0 0
          %586 = vmatprep.subr.bf16.mxu0 0
          %587 = vmatpush1.bf16.msra.mxu0 0
          %588 = vmatprep.mubr.bf16.mxu0 0
          %589 = vmatmul.mubr.bf16.gmra.mrb[0].mxu0 %v492
          %v590 = vpop.f32.mrb[0].mxu0
          %v591 = vadd.f32 0.0, %v590
          %v592 = vpop.f32.mrb[0].mxu0
          %v593 = vpop.f32.mrb[0].mxu0
          %v594 = vadd.f32 0.0, %v593
          %v595 = vpop.f32.mrb[0].mxu0
          %596 = vmatprep.mubr.bf16.mxu0 0
          %597 = vmatmul.mubr.bf16.gmra.mrb[0].mxu0 %v493
          %v598 = vpop.f32.mrb[0].mxu0
          %v599 = vadd.f32 0.0, %v598
          %v600 = vpop.f32.mrb[0].mxu0
          %v601 = vpop.f32.mrb[0].mxu0
          %v602 = vadd.f32 0.0, %v601
          %v603 = vpop.f32.mrb[0].mxu0
          %604 = vmatprep.mubr.bf16.mxu0 0
          %605 = vmatmul.mubr.bf16.gmra.mrb[0].mxu0 %v494
          %v606 = vpop.f32.mrb[0].mxu0
          %v607 = vadd.f32 0.0, %v606
          %v608 = vpop.f32.mrb[0].mxu0
          %v609 = vpop.f32.mrb[0].mxu0
          %v610 = vadd.f32 0.0, %v609
          %v611 = vpop.f32.mrb[0].mxu0
          %612 = vmatprep.mubr.bf16.mxu0 0
          %613 = vmatmul.mubr.bf16.gmra.mrb[0].mxu0 %v495
          %v614 = vpop.f32.mrb[0].mxu0
          %v615 = vadd.f32 0.0, %v614
          %v616 = vpop.f32.mrb[0].mxu0
          %v617 = vpop.f32.mrb[0].mxu0
          %v618 = vadd.f32 0.0, %v617
          %v619 = vpop.f32.mrb[0].mxu0
          %620 = vmatprep.mubr.bf16.mxu0 0
          %621 = vmatmul.mubr.bf16.gmra.mrb[0].mxu0 %v496
          %v622 = vpop.f32.mrb[0].mxu0
          %v623 = vadd.f32 0.0, %v622
          %v624 = vpop.f32.mrb[0].mxu0
          %v625 = vpop.f32.mrb[0].mxu0
          %v626 = vadd.f32 0.0, %v625
          %v627 = vpop.f32.mrb[0].mxu0
          %628 = vmatprep.mubr.bf16.mxu0 0
          %629 = vmatmul.mubr.bf16.gmra.mrb[0].mxu0 %v497
          %v630 = vpop.f32.mrb[0].mxu0
          %v631 = vadd.f32 0.0, %v630
          %v632 = vpop.f32.mrb[0].mxu0
          %v633 = vpop.f32.mrb[0].mxu0
          %v634 = vadd.f32 0.0, %v633
          %v635 = vpop.f32.mrb[0].mxu0
          %636 = vmatprep.mubr.bf16.mxu0 0
          %637 = vmatmul.mubr.bf16.gmra.mrb[0].mxu0 %v498
          %v638 = vpop.f32.mrb[0].mxu0
          %v639 = vadd.f32 0.0, %v638
          %v640 = vpop.f32.mrb[0].mxu0
          %v641 = vpop.f32.mrb[0].mxu0
          %v642 = vadd.f32 0.0, %v641
          %v643 = vpop.f32.mrb[0].mxu0
          %644 = vmatprep.mubr.bf16.mxu0 0
          %645 = vmatmul.mubr.bf16.gmra.mrb[0].mxu0 %v499
          %v646 = vpop.f32.mrb[0].mxu0
          %v647 = vadd.f32 0.0, %v646
          %v648 = vpop.f32.mrb[0].mxu0
          %v649 = vpop.f32.mrb[0].mxu0
          %v650 = vadd.f32 0.0, %v649
          %v651 = vpop.f32.mrb[0].mxu0
          %652 = vdwg.mxu0
          %v653 = vadd.f32 %v428, %v591
          %v654 = vadd.f32 %v429, %v594
          %v655 = vadd.f32 %v430, %v599
          %v656 = vadd.f32 %v431, %v602
          %v657 = vadd.f32 %v432, %v607
          %v658 = vadd.f32 %v433, %v610
          %v659 = vadd.f32 %v434, %v615
          %v660 = vadd.f32 %v435, %v618
          %v661 = vadd.f32 %v436, %v623
          %v662 = vadd.f32 %v437, %v626
          %v663 = vadd.f32 %v438, %v631
          %v664 = vadd.f32 %v439, %v634
          %v665 = vadd.f32 %v440, %v639
          %v666 = vadd.f32 %v441, %v642
          %v667 = vadd.f32 %v442, %v647
          %v668 = vadd.f32 %v443, %v650
          %669 = vst [vmem:[#allocation2] sm:$0xff] %v653
          %670 = vst [vmem:[#allocation2 + $0x8] sm:$0xff] %v654
          %671 = vst [vmem:[#allocation2 + $0x10] sm:$0xff] %v655
          %672 = vst [vmem:[#allocation2 + $0x18] sm:$0xff] %v656
          %673 = vst [vmem:[#allocation2 + $0x20] sm:$0xff] %v657
          %674 = vst [vmem:[#allocation2 + $0x28] sm:$0xff] %v658
          %675 = vst [vmem:[#allocation2 + $0x30] sm:$0xff] %v659
          %676 = vst [vmem:[#allocation2 + $0x38] sm:$0xff] %v660
          %677 = vst [vmem:[#allocation2 + $0x40] sm:$0xff] %v661
          %678 = vst [vmem:[#allocation2 + $0x48] sm:$0xff] %v662
          %679 = vst [vmem:[#allocation2 + $0x50] sm:$0xff] %v663
          %680 = vst [vmem:[#allocation2 + $0x58] sm:$0xff] %v664
          %681 = vst [vmem:[#allocation2 + $0x60] sm:$0xff] %v665
          %682 = vst [vmem:[#allocation2 + $0x68] sm:$0xff] %v666
          %683 = vst [vmem:[#allocation2 + $0x70] sm:$0xff] %v667
          %684 = vst [vmem:[#allocation2 + $0x78] sm:$0xff] %v668
        $region81: #{forward.2} parent=68 // pred_fallthru
          _
        %p685 = scmp.eq.s32.totalorder %s33, 1
        // Predicated region
        $region82: #{forward.2} parent=68 // pred_check
          %p686 = pneg %p685
        $region83: #{forward.2} parent=68 // pred_check_branch
          %688 = sbr.rel (%p686) target = $region85
        $region84: #{forward.2} parent=68 // pred_region
          %v689 = vld [vmem:[#allocation2] sm:$0xff]
          %v690 = vld [vmem:[#allocation2 + $0x8] sm:$0xff]
          %v691 = vld [vmem:[#allocation2 + $0x10] sm:$0xff]
          %v692 = vld [vmem:[#allocation2 + $0x18] sm:$0xff]
          %v693 = vld [vmem:[#allocation2 + $0x20] sm:$0xff]
          %v694 = vld [vmem:[#allocation2 + $0x28] sm:$0xff]
          %v695 = vld [vmem:[#allocation2 + $0x30] sm:$0xff]
          %v696 = vld [vmem:[#allocation2 + $0x38] sm:$0xff]
          %v697 = vld [vmem:[#allocation2 + $0x40] sm:$0xff]
          %v698 = vld [vmem:[#allocation2 + $0x48] sm:$0xff]
          %v699 = vld [vmem:[#allocation2 + $0x50] sm:$0xff]
          %v700 = vld [vmem:[#allocation2 + $0x58] sm:$0xff]
          %v701 = vld [vmem:[#allocation2 + $0x60] sm:$0xff]
          %v702 = vld [vmem:[#allocation2 + $0x68] sm:$0xff]
          %v703 = vld [vmem:[#allocation2 + $0x70] sm:$0xff]
          %v704 = vld [vmem:[#allocation2 + $0x78] sm:$0xff]
          %v705 = vld [vmem:[%s364] sm:$0xff]
          %v706 = vld [vmem:[%s364 + $0x8] sm:$0xff]
          %v707 = vld [vmem:[%s364 + $0x10] sm:$0xff]
          %v708 = vld [vmem:[%s364 + $0x18] sm:$0xff]
          %v709 = vld [vmem:[%s364 + $0x20] sm:$0xff]
          %v710 = vld [vmem:[%s364 + $0x28] sm:$0xff]
          %v711 = vld [vmem:[%s364 + $0x30] sm:$0xff]
          %v712 = vld [vmem:[%s364 + $0x38] sm:$0xff]
          %v713 = vld [vmem:[%s364 + $0x40] sm:$0xff]
          %v714 = vld [vmem:[%s364 + $0x48] sm:$0xff]
          %v715 = vld [vmem:[%s364 + $0x50] sm:$0xff]
          %v716 = vld [vmem:[%s364 + $0x58] sm:$0xff]
          %v717 = vld [vmem:[%s364 + $0x60] sm:$0xff]
          %v718 = vld [vmem:[%s364 + $0x68] sm:$0xff]
          %v719 = vld [vmem:[%s364 + $0x70] sm:$0xff]
          %v720 = vld [vmem:[%s364 + $0x78] sm:$0xff]
          %v721 = vadd.f32 %v705, %v689
          %v722 = vadd.f32 %v706, %v690
          %v723 = vadd.f32 %v707, %v691
          %v724 = vadd.f32 %v708, %v692
          %v725 = vadd.f32 %v709, %v693
          %v726 = vadd.f32 %v710, %v694
          %v727 = vadd.f32 %v711, %v695
          %v728 = vadd.f32 %v712, %v696
          %v729 = vadd.f32 %v713, %v697
          %v730 = vadd.f32 %v714, %v698
          %v731 = vadd.f32 %v715, %v699
          %v732 = vadd.f32 %v716, %v700
          %v733 = vadd.f32 %v717, %v701
          %v734 = vadd.f32 %v718, %v702
          %v735 = vadd.f32 %v719, %v703
          %v736 = vadd.f32 %v720, %v704
          %737 = vst [vmem:[%s370] sm:$0xff] %v721
          %738 = vst [vmem:[%s370 + $0x8] sm:$0xff] %v722
          %739 = vst [vmem:[%s370 + $0x10] sm:$0xff] %v723
          %740 = vst [vmem:[%s370 + $0x18] sm:$0xff] %v724
          %741 = vst [vmem:[%s370 + $0x20] sm:$0xff] %v725
          %742 = vst [vmem:[%s370 + $0x28] sm:$0xff] %v726
          %743 = vst [vmem:[%s370 + $0x30] sm:$0xff] %v727
          %744 = vst [vmem:[%s370 + $0x38] sm:$0xff] %v728
          %745 = vst [vmem:[%s370 + $0x40] sm:$0xff] %v729
          %746 = vst [vmem:[%s370 + $0x48] sm:$0xff] %v730
          %747 = vst [vmem:[%s370 + $0x50] sm:$0xff] %v731
          %748 = vst [vmem:[%s370 + $0x58] sm:$0xff] %v732
          %749 = vst [vmem:[%s370 + $0x60] sm:$0xff] %v733
          %750 = vst [vmem:[%s370 + $0x68] sm:$0xff] %v734
          %751 = vst [vmem:[%s370 + $0x70] sm:$0xff] %v735
          %752 = vst [vmem:[%s370 + $0x78] sm:$0xff] %v736
          %v753 = vpack.c.bf16 %v690, %v689
          %v754 = vpack.c.bf16 %v692, %v691
          %v755 = vpack.c.bf16 %v694, %v693
          %v756 = vpack.c.bf16 %v696, %v695
          %v757 = vpack.c.bf16 %v698, %v697
          %v758 = vpack.c.bf16 %v700, %v699
          %v759 = vpack.c.bf16 %v702, %v701
          %v760 = vpack.c.bf16 %v704, %v703
          %v769 = vunpack.c.l.b16 %v753
          %v770 = vunpack.c.h.b16 %v753
          %v771 = vunpack.c.l.b16 %v754
          %v772 = vunpack.c.h.b16 %v754
          %v773 = vunpack.c.l.b16 %v755
          %v774 = vunpack.c.h.b16 %v755
          %v775 = vunpack.c.l.b16 %v756
          %v776 = vunpack.c.h.b16 %v756
          %v777 = vunpack.c.l.b16 %v757
          %v778 = vunpack.c.h.b16 %v757
          %v779 = vunpack.c.l.b16 %v758
          %v780 = vunpack.c.h.b16 %v758
          %v781 = vunpack.c.l.b16 %v759
          %v782 = vunpack.c.h.b16 %v759
          %v783 = vunpack.c.l.b16 %v760
          %v784 = vunpack.c.h.b16 %v760
          %v785 = vpack.c.b16 %v769, %v769
          %v786 = vpack.c.b16 %v770, %v770
          %v787 = vpack.c.b16 %v771, %v771
          %v788 = vpack.c.b16 %v772, %v772
          %v789 = vpack.c.b16 %v773, %v773
          %v790 = vpack.c.b16 %v774, %v774
          %v791 = vpack.c.b16 %v775, %v775
          %v792 = vpack.c.b16 %v776, %v776
          %v793 = vpack.c.b16 %v777, %v777
          %v794 = vpack.c.b16 %v778, %v778
          %v795 = vpack.c.b16 %v779, %v779
          %v796 = vpack.c.b16 %v780, %v780
          %v797 = vpack.c.b16 %v781, %v781
          %v798 = vpack.c.b16 %v782, %v782
          %v799 = vpack.c.b16 %v783, %v783
          %v800 = vpack.c.b16 %v784, %v784
          %817 = vst [vmem:[%s376] sm:$0xf] %v785
          %818 = vst [vmem:[%s376 + $0x4] sm:$0xf] %v786
          %819 = vst [vmem:[%s376 + $0x8] sm:$0xf] %v787
          %820 = vst [vmem:[%s376 + $0xc] sm:$0xf] %v788
          %821 = vst [vmem:[%s376 + $0x10] sm:$0xf] %v789
          %822 = vst [vmem:[%s376 + $0x14] sm:$0xf] %v790
          %823 = vst [vmem:[%s376 + $0x18] sm:$0xf] %v791
          %824 = vst [vmem:[%s376 + $0x1c] sm:$0xf] %v792
          %825 = vst [vmem:[%s376 + $0x20] sm:$0xf] %v793
          %826 = vst [vmem:[%s376 + $0x24] sm:$0xf] %v794
          %827 = vst [vmem:[%s376 + $0x28] sm:$0xf] %v795
          %828 = vst [vmem:[%s376 + $0x2c] sm:$0xf] %v796
          %829 = vst [vmem:[%s376 + $0x30] sm:$0xf] %v797
          %830 = vst [vmem:[%s376 + $0x34] sm:$0xf] %v798
          %831 = vst [vmem:[%s376 + $0x38] sm:$0xf] %v799
          %832 = vst [vmem:[%s376 + $0x3c] sm:$0xf] %v800
        $region85: #{forward.2} parent=68 // pred_fallthru
          _
        %s833 = smul.u32 16, %s32
        %p834 = scmp.lt.s32.totalorder %s833, 31
        %s835 = scalar_select %p834, %s833, 31
        %s836 = smul.addr %s835, 8
        %s837 = scalar_lea.vmem %s5, %s836
        %s838 = smul.u32 16, %s32
        %p839 = scmp.lt.s32.totalorder %s838, 31
        %s840 = scalar_select %p839, %s838, 31
        %s841 = smul.addr %s840, 4
        %s842 = scalar_lea.vmem %s6, %s841
        // Predicated region
        $region86: #{forward.2} parent=68 // pred_check
          %p843 = pneg %p139
        $region87: #{forward.2} parent=68 // pred_check_branch
          %845 = sbr.rel (%p843) target = $region89
        $region88: #{forward.2} parent=68 // pred_region
          %s846 = smul.u32 16, %s32
        $region89: #{forward.2} parent=68 // pred_fallthru
          _
        // Predicated region
        $region90: #{forward.2} parent=68 // pred_check
          %p847 = pneg %p165
        $region91: #{forward.2} parent=68 // pred_check_branch
          %849 = sbr.rel (%p847) target = $region93
        $region92: #{forward.2} parent=68 // pred_region
          %s850 = smul.u32 16, %s32
        $region93: #{forward.2} parent=68 // pred_fallthru
          _
      $region69: #{forward.2} parent=5 // pred_fallthru
        _
      %p851 = scmp.le.s32.totalorder 2, %s23
      // Predicated region
      $region94: #{forward.2} parent=5 // pred_check
        %p852 = pneg %p851
      $region95: #{forward.2} parent=5 // pred_check_branch
        %854 = sbr.rel (%p852) target = $region97
      $region96: #{forward.2} parent=5 // pred_region
        %s855 = ssub.s32 %s23, 2
        // Predicated region
        $region98: #{forward.2} parent=96 // pred_check
          %p856 = pneg %p145
        $region99: #{forward.2} parent=96 // pred_check_branch
          %858 = sbr.rel (%p856) target = $region101
        $region100: #{forward.2} parent=96 // pred_region
          %s859 = smul.u32 16, %s34
          %p860 = scmp.lt.s32.totalorder %s859, 31
          %s861 = scalar_select %p860, %s859, 31
          %s862 = smul.addr %s861, 8
          %s863 = scalar_lea.vmem %s5, %s862
        $region101: #{forward.2} parent=96 // pred_fallthru
          _
        // Predicated region
        $region102: #{forward.2} parent=96 // pred_check
          %p864 = pneg %p171
        $region103: #{forward.2} parent=96 // pred_check_branch
          %866 = sbr.rel (%p864) target = $region105
        $region104: #{forward.2} parent=96 // pred_region
          %s867 = smul.u32 16, %s34
          %p868 = scmp.lt.s32.totalorder %s867, 31
          %s869 = scalar_select %p868, %s867, 31
          %s870 = smul.addr %s869, 4
          %s871 = scalar_lea.vmem %s6, %s870
        $region105: #{forward.2} parent=96 // pred_fallthru
          _
      $region97: #{forward.2} parent=5 // pred_fallthru
        _
    $region6: #{forward.2} parent=1 // loop_footer
      %s27 = sadd.s32 1, %s23
    $region7: #{forward.2} parent=1 // loop_footer_branch
      %22 = sbr.rel target = $region3
    $region8: #{forward.2} parent=1 // loop_exit
      _

// kernel: forward.3
$region0: #{forward.3}
  #allocation0 [shape = 'u32[]', space=smem, size = 0x4, offset = 0x4, fixed_abs, tag = 'smem constant byte address 0x4 - core index']
  #allocation1 [shape = 'u32[144,128]{1,0:T(1,128)}', space=vmem, size = 0x12000, scoped, tag = 'internal scratch']
  #allocation2 [shape = 'f32[128,128]{1,0:T(8,128)}', space=vmem, size = 0x10000, scoped, tag = 'scratch operand']
  #allocation3 [shape = 's32[1]{0}', space=sflag, size = 0x4, scoped, tag = 'scoped memory for forward.3']
  #allocation4 [shape = 'u8[512]{0}', space=smem, size = 0x200, scoped, tag = 'prefetched SMEM operand 0']
  #allocation5 [shape = 'u8[512]{0}', space=smem, size = 0x200, scoped, tag = 'prefetched SMEM operand 1']
  %s0 = inlined_call_operand.vmem [shape: s32[2], index: 0, kind: input, shape index: {}]
  %s1 = inlined_call_operand.vmem [shape: s32[4], index: 1, kind: input, shape index: {}]
  %s2 = inlined_call_operand.vmem [shape: bf16[256,256], index: 2, kind: input, shape index: {}]
  %s3 = inlined_call_operand.vmem [shape: bf16[256,128], index: 3, kind: input, shape index: {}]
  %s4 = inlined_call_operand.vmem [shape: f32[256,128], index: 4, kind: input, shape index: {}]
  %s5 = inlined_call_operand.vmem [shape: f32[256,128], index: 5, kind: output, shape index: {0}]
  %s6 = inlined_call_operand.hbm [shape: bf16[256,128], index: 6, kind: output, shape index: {1}]
  %7 = xla_tuple %s5, %s6
  %s8 = sld [smem:[#allocation0]]
  $region106: #{forward.3} parent=0
    _
  %s10 = ssub.s32 1, %s8
  %s11 = scalar_select 0, %s10, %s8
  %s12 = sshll.u32 %s0, 4
  %s13 = int_to_ptr.vmem [resolvable:$true] %s12
  %15 = dma.vmem_to_smem %s13, 16, [#allocation4], [#allocation3]
  %s16 = sshll.u32 %s1, 4
  %s17 = int_to_ptr.vmem [resolvable:$true] %s16
  %19 = dma.vmem_to_smem %s17, 16, [#allocation5], [#allocation3]
  %20 = dma.done [#allocation3], 32
  %21 = sfence
  $region1: #{forward.3} parent=0
    #allocation6 [shape = 'u8[65536]{0}', space=vmem, size = 0x10000, scoped, tag = 'input window, operand 2']
    #allocation7 [shape = 'u8[65536]{0}', space=vmem, size = 0x10000, scoped, tag = 'output window, operand 1']
    #allocation8 [shape = 's32[2]{0}', space=sflag, size = 0x8, scoped, tag = 'scoped memory for forward.3']
    %22 = vsyncpa [#allocation8], 0
    %s23 = scalar_lea.sflag [#allocation8], 1
    %24 = vsyncpa %s23, 0
    loop: start=0, step=1, limit=6
    $region2: #{forward.3} parent=1 // loop_pre_header
      _
    $region3: #{forward.3} parent=1 // loop_header
      %s26 = sphi 0, %s30
      %p27 = scmp.ge.s32.totalorder %s26, 6
      %s33 = sphi 0, %s45
      %s34 = sphi 0, %s41
      %s35 = sphi 0, %s33
      %s36 = sphi 0, %s34
      %s37 = sphi 0, %s35
      %s38 = sphi 0, %s36
      %s56 = sphi 0, %s58
      %s59 = sphi 0, %s56
      %s60 = sphi 0, %s59
      %s76 = sphi 0, %s60
      %s80 = sphi 0, %s80
      %s82 = sphi 0, %s80
      %s83 = sphi 0, %s82
      %s97 = sphi 0, %s83
      %s103 = sphi 0, %s105
      %s106 = sphi 0, %s103
      %s107 = sphi 0, %s106
      %s123 = sphi 0, %s107
      %s129 = sphi 0, %s131
      %s132 = sphi 0, %s129
      %s133 = sphi 0, %s132
      %s149 = sphi 0, %s133
      %s155 = sphi 0, %s157
      %s158 = sphi 0, %s155
      %s159 = sphi 0, %s158
      %s175 = sphi 0, %s159
    $region4: #{forward.3} parent=1 // loop_header_branch
      %29 = sbr.rel (%p27) target = $region8
    $region5: #{forward.3} parent=1 // loop_body
      %s31 = ssub.s32 %s26, 1
      %s32 = ssub.s32 %s26, 2
      %s39 = sadd.s32 1, %s34
      %p40 = scmp.ge.s32.totalorder %s39, 2
      %s41 = scalar_select %p40, 0, %s39
      %s42 = sadd.s32 1, %s33
      %s43 = scalar_select %p40, %s42, %s33
      %p44 = scmp.ge.s32.totalorder %s43, 2
      %s45 = scalar_select %p44, 0, %s43
      %s46 = smul.u32 %s33, 2
      %s47 = sadd.s32 %s46, %s34
      %s48 = sld [smem:[#allocation5 + %s47]]
      %s49 = smul.u32 %s45, 2
      %s50 = sadd.s32 %s49, %s41
      %s51 = sld [smem:[#allocation5 + %s50]]
      %s52 = ssub.s32 %s33, %s45
      %s53 = ssub.s32 %s48, %s51
      %s54 = sor.u32 %s52, %s53
      %p55 = scmp.eq.s32.totalorder %s54, 0
      %s57 = sadd.s32 %s56, 1
      %s58 = scalar_select %p55, %s56, %s57
      %p61 = pneg %p55
      %p62 = scmp.eq.s32.totalorder %s26, 3
      %p63 = por %p61, %p62
      %p64 = scmp.ne.s32.totalorder %s56, %s59
      %p65 = scmp.eq.s32.totalorder %s26, 0
      %p66 = por %p64, %p65
      %p67 = scmp.ne.s32.totalorder %s56, %s59
      %p68 = scmp.eq.s32.totalorder %s31, 3
      %p69 = por %p67, %p68
      %p70 = scmp.ne.s32.totalorder %s59, %s60
      %p71 = scmp.eq.s32.totalorder %s31, 0
      %p72 = por %p70, %p71
      %p73 = scmp.ne.s32.totalorder %s59, %s60
      %p74 = scmp.eq.s32.totalorder %s32, 3
      %p75 = por %p73, %p74
      %p77 = scmp.ne.s32.totalorder %s60, %s76
      %p78 = scmp.eq.s32.totalorder %s32, 0
      %p79 = por %p77, %p78
      %s81 = sadd.s32 %s80, 1
      %p84 = scmp.eq.s32.totalorder %s26, 3
      %p85 = scmp.ne.s32.totalorder %s80, %s82
      %p86 = scmp.eq.s32.totalorder %s26, 0
      %p87 = por %p85, %p86
      %p88 = scmp.ne.s32.totalorder %s80, %s82
      %p89 = scmp.eq.s32.totalorder %s31, 3
      %p90 = por %p88, %p89
      %p91 = scmp.ne.s32.totalorder %s82, %s83
      %p92 = scmp.eq.s32.totalorder %s31, 0
      %p93 = por %p91, %p92
      %p94 = scmp.ne.s32.totalorder %s82, %s83
      %p95 = scmp.eq.s32.totalorder %s32, 3
      %p96 = por %p94, %p95
      %p98 = scmp.ne.s32.totalorder %s83, %s97
      %p99 = scmp.eq.s32.totalorder %s32, 0
      %p100 = por %p98, %p99
      %s101 = ssub.s32 %s33, %s45
      %p102 = scmp.eq.s32.totalorder %s101, 0
      %s104 = sadd.s32 %s103, 1
      %s105 = scalar_select %p102, %s103, %s104
      %p108 = pneg %p102
      %p109 = scmp.eq.s32.totalorder %s26, 3
      %p110 = por %p108, %p109
      %p111 = scmp.ne.s32.totalorder %s103, %s106
      %p112 = scmp.eq.s32.totalorder %s26, 0
      %p113 = por %p111, %p112
      %p114 = scmp.ne.s32.totalorder %s103, %s106
      %p115 = scmp.eq.s32.totalorder %s31, 3
      %p116 = por %p114, %p115
      %p117 = scmp.ne.s32.totalorder %s106, %s107
      %p118 = scmp.eq.s32.totalorder %s31, 0
      %p119 = por %p117, %p118
      %p120 = scmp.ne.s32.totalorder %s106, %s107
      %p121 = scmp.eq.s32.totalorder %s32, 3
      %p122 = por %p120, %p121
      %p124 = scmp.ne.s32.totalorder %s107, %s123
      %p125 = scmp.eq.s32.totalorder %s32, 0
      %p126 = por %p124, %p125
      %s127 = ssub.s32 %s33, %s45
      %p128 = scmp.eq.s32.totalorder %s127, 0
      %s130 = sadd.s32 %s129, 1
      %s131 = scalar_select %p128, %s129, %s130
      %p134 = pneg %p128
      %p135 = scmp.eq.s32.totalorder %s26, 3
      %p136 = por %p134, %p135
      %p137 = scmp.ne.s32.totalorder %s129, %s132
      %p138 = scmp.eq.s32.totalorder %s26, 0
      %p139 = por %p137, %p138
      %p140 = scmp.ne.s32.totalorder %s129, %s132
      %p141 = scmp.eq.s32.totalorder %s31, 3
      %p142 = por %p140, %p141
      %p143 = scmp.ne.s32.totalorder %s132, %s133
      %p144 = scmp.eq.s32.totalorder %s31, 0
      %p145 = por %p143, %p144
      %p146 = scmp.ne.s32.totalorder %s132, %s133
      %p147 = scmp.eq.s32.totalorder %s32, 3
      %p148 = por %p146, %p147
      %p150 = scmp.ne.s32.totalorder %s133, %s149
      %p151 = scmp.eq.s32.totalorder %s32, 0
      %p152 = por %p150, %p151
      %s153 = ssub.s32 %s33, %s45
      %p154 = scmp.eq.s32.totalorder %s153, 0
      %s156 = sadd.s32 %s155, 1
      %s157 = scalar_select %p154, %s155, %s156
      %p160 = pneg %p154
      %p161 = scmp.eq.s32.totalorder %s26, 3
      %p162 = por %p160, %p161
      %p163 = scmp.ne.s32.totalorder %s155, %s158
      %p164 = scmp.eq.s32.totalorder %s26, 0
      %p165 = por %p163, %p164
      %p166 = scmp.ne.s32.totalorder %s155, %s158
      %p167 = scmp.eq.s32.totalorder %s31, 3
      %p168 = por %p166, %p167
      %p169 = scmp.ne.s32.totalorder %s158, %s159
      %p170 = scmp.eq.s32.totalorder %s31, 0
      %p171 = por %p169, %p170
      %p172 = scmp.ne.s32.totalorder %s158, %s159
      %p173 = scmp.eq.s32.totalorder %s32, 3
      %p174 = por %p172, %p173
      %p176 = scmp.ne.s32.totalorder %s159, %s175
      %p177 = scmp.eq.s32.totalorder %s32, 0
      %p178 = por %p176, %p177
      %p179 = scmp.le.s32.totalorder 1, %s26
      %p180 = scmp.lt.s32.totalorder %s26, 5
      %p181 = pnand %p179, %p180
      %p182 = pneg %p181
      // Predicated region
      $region9: #{forward.3} parent=5 // pred_check
        _
      $region10: #{forward.3} parent=5 // pred_check_branch
        %184 = sbr.rel (%p181) target = $region12
      $region11: #{forward.3} parent=5 // pred_region
        %s185 = ssub.s32 %s26, 1
        // Predicated region
        $region13: #{forward.3} parent=11 // pred_check
          %p186 = pneg %p93
        $region14: #{forward.3} parent=11 // pred_check_branch
          %188 = sbr.rel (%p186) target = $region16
        $region15: #{forward.3} parent=11 // pred_region
          _
        $region16: #{forward.3} parent=11 // pred_fallthru
          _
      $region12: #{forward.3} parent=5 // pred_fallthru
        _
      %p189 = scmp.lt.s32.totalorder %s26, 4
      // Predicated region
      $region17: #{forward.3} parent=5 // pred_check
        %p190 = pneg %p189
      $region18: #{forward.3} parent=5 // pred_check_branch
        %192 = sbr.rel (%p190) target = $region20
      $region19: #{forward.3} parent=5 // pred_region
        // Predicated region
        $region21: #{forward.3} parent=19 // pred_check
          %p193 = pneg %p66
        $region22: #{forward.3} parent=19 // pred_check_branch
          %195 = sbr.rel (%p193) target = $region24
        $region23: #{forward.3} parent=19 // pred_region
          %s196 = sand.u32 %s56, 1
          %s197 = sand.u32 %s56, 1
          %s198 = smul.addr %s197, 64
          %s199 = scalar_lea.vmem [#allocation6], %s198
          %s200 = smul.u32 %s33, 2
          %s201 = sadd.s32 %s200, %s34
          %s202 = sld [smem:[#allocation5 + %s201]]
          %s203 = smul.u32 16, %s33
          %s204 = smul.addr %s203, 2
          %s205 = sadd.s32 %s202, %s204
          %s206 = smul.addr %s205, 4
          %s207 = scalar_lea.vmem %s2, %s206
          // Predicated region
          $region25: #{forward.3} parent=23 // pred_check
            _
          $region26: #{forward.3} parent=23 // pred_check_branch
            %209 = sbr.rel (0) target = $region28
          $region27: #{forward.3} parent=23 // pred_region
            // Predicated region
            $region29: #{forward.3} parent=27 // pred_check
              _
            $region30: #{forward.3} parent=27 // pred_check_branch
              %211 = sbr.rel target = $region32
            $region31: #{forward.3} parent=27 // pred_region
              // Predicated region
              $region44: #{forward.3} parent=31 // pred_check
                _
              $region45: #{forward.3} parent=31 // pred_check_branch
                %256 = sbr.rel (0) target = $region47
              $region46: #{forward.3} parent=31 // pred_region
                loop: start=0, step=1, limit=1
                $region48: #{forward.3} parent=46 // loop_pre_header
                  _
                $region49: #{forward.3} parent=46 // loop_header
                  %s258 = sphi 0, %s262
                  %p259 = scmp.ge.s32.totalorder %s258, 1
                  %s263 = sphi %s207, %s207
                  %s264 = sphi %s199, %s199
                $region50: #{forward.3} parent=46 // loop_header_branch
                  %261 = sbr.rel (%p259) target = $region54
                $region51: #{forward.3} parent=46 // loop_body
                  _
                $region52: #{forward.3} parent=46 // loop_footer
                  %s262 = sadd.s32 1, %s258
                $region53: #{forward.3} parent=46 // loop_footer_branch
                  %257 = sbr.rel target = $region49
                $region54: #{forward.3} parent=46 // loop_exit
                  _
                loop: start=0, step=1, limit=1
                $region55: #{forward.3} parent=46 // loop_pre_header
                  _
                $region56: #{forward.3} parent=46 // loop_header
                  %s267 = sphi 0, %s271
                  %p268 = scmp.ge.s32.totalorder %s267, 1
                  %s272 = sphi %s207, %s207
                  %s273 = sphi %s199, %s199
                $region57: #{forward.3} parent=46 // loop_header_branch
                  %270 = sbr.rel (%p268) target = $region61
                $region58: #{forward.3} parent=46 // loop_body
                  %v274 = vld [vmem:[%s272] sm:$0xf]
                  %275 = vst [vmem:[%s273] sm:$0xf] %v274
                  %v276 = vld [vmem:[%s272 + $0x8] sm:$0xf]
                  %277 = vst [vmem:[%s273 + $0x4] sm:$0xf] %v276
                  %v278 = vld [vmem:[%s272 + $0x10] sm:$0xf]
                  %279 = vst [vmem:[%s273 + $0x8] sm:$0xf] %v278
                  %v280 = vld [vmem:[%s272 + $0x18] sm:$0xf]
                  %281 = vst [vmem:[%s273 + $0xc] sm:$0xf] %v280
                  %v282 = vld [vmem:[%s272 + $0x20] sm:$0xf]
                  %283 = vst [vmem:[%s273 + $0x10] sm:$0xf] %v282
                  %v284 = vld [vmem:[%s272 + $0x28] sm:$0xf]
                  %285 = vst [vmem:[%s273 + $0x14] sm:$0xf] %v284
                  %v286 = vld [vmem:[%s272 + $0x30] sm:$0xf]
                  %287 = vst [vmem:[%s273 + $0x18] sm:$0xf] %v286
                  %v288 = vld [vmem:[%s272 + $0x38] sm:$0xf]
                  %289 = vst [vmem:[%s273 + $0x1c] sm:$0xf] %v288
                  %v290 = vld [vmem:[%s272 + $0x40] sm:$0xf]
                  %291 = vst [vmem:[%s273 + $0x20] sm:$0xf] %v290
                  %v292 = vld [vmem:[%s272 + $0x48] sm:$0xf]
                  %293 = vst [vmem:[%s273 + $0x24] sm:$0xf] %v292
                  %v294 = vld [vmem:[%s272 + $0x50] sm:$0xf]
                  %295 = vst [vmem:[%s273 + $0x28] sm:$0xf] %v294
                  %v296 = vld [vmem:[%s272 + $0x58] sm:$0xf]
                  %297 = vst [vmem:[%s273 + $0x2c] sm:$0xf] %v296
                  %v298 = vld [vmem:[%s272 + $0x60] sm:$0xf]
                  %299 = vst [vmem:[%s273 + $0x30] sm:$0xf] %v298
                  %v300 = vld [vmem:[%s272 + $0x68] sm:$0xf]
                  %301 = vst [vmem:[%s273 + $0x34] sm:$0xf] %v300
                  %v302 = vld [vmem:[%s272 + $0x70] sm:$0xf]
                  %303 = vst [vmem:[%s273 + $0x38] sm:$0xf] %v302
                  %v304 = vld [vmem:[%s272 + $0x78] sm:$0xf]
                  %305 = vst [vmem:[%s273 + $0x3c] sm:$0xf] %v304
                $region59: #{forward.3} parent=46 // loop_footer
                  %s271 = sadd.s32 1, %s267
                $region60: #{forward.3} parent=46 // loop_footer_branch
                  %266 = sbr.rel target = $region56
                $region61: #{forward.3} parent=46 // loop_exit
                  _
              $region47: #{forward.3} parent=31 // pred_fallthru
                _
            $region32: #{forward.3} parent=27 // pred_fallthru
              _
            // Predicated region
            $region33: #{forward.3} parent=27 // pred_check
              _
            $region34: #{forward.3} parent=27 // pred_check_branch
              %213 = sbr.rel (0) target = $region36
            $region35: #{forward.3} parent=27 // pred_region
              loop: start=0, step=1, limit=1
              $region37: #{forward.3} parent=35 // loop_pre_header
                _
              $region38: #{forward.3} parent=35 // loop_header
                %s216 = sphi 0, %s220
                %p217 = scmp.ge.s32.totalorder %s216, 1
                %s221 = sphi %s207, %s207
                %s222 = sphi %s199, %s199
              $region39: #{forward.3} parent=35 // loop_header_branch
                %219 = sbr.rel (%p217) target = $region43
              $region40: #{forward.3} parent=35 // loop_body
                %v223 = vld [vmem:[%s221] sm:$0xf]
                %224 = vst [vmem:[%s222] sm:$0xf] %v223
                %v225 = vld [vmem:[%s221 + $0x8] sm:$0xf]
                %226 = vst [vmem:[%s222 + $0x4] sm:$0xf] %v225
                %v227 = vld [vmem:[%s221 + $0x10] sm:$0xf]
                %228 = vst [vmem:[%s222 + $0x8] sm:$0xf] %v227
                %v229 = vld [vmem:[%s221 + $0x18] sm:$0xf]
                %230 = vst [vmem:[%s222 + $0xc] sm:$0xf] %v229
                %v231 = vld [vmem:[%s221 + $0x20] sm:$0xf]
                %232 = vst [vmem:[%s222 + $0x10] sm:$0xf] %v231
                %v233 = vld [vmem:[%s221 + $0x28] sm:$0xf]
                %234 = vst [vmem:[%s222 + $0x14] sm:$0xf] %v233
                %v235 = vld [vmem:[%s221 + $0x30] sm:$0xf]
                %236 = vst [vmem:[%s222 + $0x18] sm:$0xf] %v235
                %v237 = vld [vmem:[%s221 + $0x38] sm:$0xf]
                %238 = vst [vmem:[%s222 + $0x1c] sm:$0xf] %v237
                %v239 = vld [vmem:[%s221 + $0x40] sm:$0xf]
                %240 = vst [vmem:[%s222 + $0x20] sm:$0xf] %v239
                %v241 = vld [vmem:[%s221 + $0x48] sm:$0xf]
                %242 = vst [vmem:[%s222 + $0x24] sm:$0xf] %v241
                %v243 = vld [vmem:[%s221 + $0x50] sm:$0xf]
                %244 = vst [vmem:[%s222 + $0x28] sm:$0xf] %v243
                %v245 = vld [vmem:[%s221 + $0x58] sm:$0xf]
                %246 = vst [vmem:[%s222 + $0x2c] sm:$0xf] %v245
                %v247 = vld [vmem:[%s221 + $0x60] sm:$0xf]
                %248 = vst [vmem:[%s222 + $0x30] sm:$0xf] %v247
                %v249 = vld [vmem:[%s221 + $0x68] sm:$0xf]
                %250 = vst [vmem:[%s222 + $0x34] sm:$0xf] %v249
                %v251 = vld [vmem:[%s221 + $0x70] sm:$0xf]
                %252 = vst [vmem:[%s222 + $0x38] sm:$0xf] %v251
                %v253 = vld [vmem:[%s221 + $0x78] sm:$0xf]
                %254 = vst [vmem:[%s222 + $0x3c] sm:$0xf] %v253
              $region41: #{forward.3} parent=35 // loop_footer
                %s220 = sadd.s32 1, %s216
              $region42: #{forward.3} parent=35 // loop_footer_branch
                %215 = sbr.rel target = $region38
              $region43: #{forward.3} parent=35 // loop_exit
                _
            $region36: #{forward.3} parent=27 // pred_fallthru
              _
          $region28: #{forward.3} parent=23 // pred_fallthru
            _
          %306 = vnop
        $region24: #{forward.3} parent=19 // pred_fallthru
          _
        // Predicated region
        $region62: #{forward.3} parent=19 // pred_check
          %p307 = pneg %p113
        $region63: #{forward.3} parent=19 // pred_check_branch
          %309 = sbr.rel (%p307) target = $region65
        $region64: #{forward.3} parent=19 // pred_region
          %s310 = smul.u32 16, %s33
          %p311 = scmp.lt.s32.totalorder %s310, 31
          %s312 = scalar_select %p311, %s310, 31
          %s313 = smul.addr %s312, 8
          %s314 = scalar_lea.vmem %s4, %s313
          %s315 = smul.u32 16, %s33
        $region65: #{forward.3} parent=19 // pred_fallthru
          _
      $region20: #{forward.3} parent=5 // pred_fallthru
        _
      %p316 = scmp.le.s32.totalorder 1, %s26
      %p317 = scmp.lt.s32.totalorder %s26, 5
      %p318 = pnand %p316, %p317
      %p319 = pneg %p318
      // Predicated region
      $region66: #{forward.3} parent=5 // pred_check
        _
      $region67: #{forward.3} parent=5 // pred_check_branch
        %321 = sbr.rel (%p318) target = $region69
      $region68: #{forward.3} parent=5 // pred_region
        %s322 = ssub.s32 %s26, 1
        %s323 = sand.u32 %s59, 1
        %s324 = sand.u32 %s59, 1
        %s325 = smul.addr %s324, 64
        %s326 = scalar_lea.vmem [#allocation6], %s325
        // Predicated region
        $region70: #{forward.3} parent=68 // pred_check
          %p327 = pneg %p72
        $region71: #{forward.3} parent=68 // pred_check_branch
          %329 = sbr.rel (%p327) target = $region73
        $region72: #{forward.3} parent=68 // pred_region
          _
        $region73: #{forward.3} parent=68 // pred_fallthru
          _
        %s330 = sand.u32 %s59, 1
        %s331 = sand.u32 %s59, 1
        %s332 = smul.addr %s331, 64
        %s333 = scalar_lea.vmem [#allocation6], %s332
        %p334 = pneg %p72
        %p335 = pneg %p69
        %p336 = pneg %p93
        %p337 = pneg %p90
        %s338 = smul.u32 16, %s35
        %p339 = scmp.lt.s32.totalorder %s338, 31
        %s340 = scalar_select %p339, %s338, 31
        %s341 = smul.addr %s340, 8
        %s342 = scalar_lea.vmem %s4, %s341
        %p343 = pneg %p119
        %p344 = pneg %p116
        %p345 = pneg %p145
        %p346 = pneg %p142
        %s347 = smul.u32 16, %s35
        %p348 = scmp.lt.s32.totalorder %s347, 31
        %s349 = scalar_select %p348, %s347, 31
        %s350 = smul.addr %s349, 8
        %s351 = scalar_lea.vmem %s5, %s350
        %p352 = pneg %p171
        %p353 = pneg %p168
        %s354 = sand.u32 %s158, 1
        %s355 = scalar_lea.sflag [#allocation8], %s354
        %s356 = sand.u32 %s158, 1
        %s357 = smul.addr %s356, 64
        %s358 = scalar_lea.vmem [#allocation7], %s357
        %s359 = smul.u32 %s35, 2
        %s360 = sadd.s32 %s359, %s36
        %s361 = sld [smem:[#allocation5 + %s360]]
        %s362 = smul.u32 16, %s35
        %s363 = smul.u32 16, %s35
        %p364 = scmp.lt.s32.totalorder %s363, 31
        %s365 = scalar_select %p364, %s363, 31
        %s366 = smul.addr %s365, 8
        %s367 = scalar_lea.vmem %s4, %s366
        %s368 = smul.u32 16, %s35
        %s369 = smul.u32 16, %s35
        %p370 = scmp.lt.s32.totalorder %s369, 31
        %s371 = scalar_select %p370, %s369, 31
        %s372 = smul.addr %s371, 8
        %s373 = scalar_lea.vmem %s5, %s372
        %s374 = smul.u32 16, %s35
        %s375 = smul.u32 16, %s35
        %p377 = scmp.eq.s32.totalorder %s36, 0
        // Predicated region
        $region74: #{forward.3} parent=68 // pred_check
          %p378 = pneg %p377
        $region75: #{forward.3} parent=68 // pred_check_branch
          %380 = sbr.rel (%p378) target = $region77
        $region76: #{forward.3} parent=68 // pred_region
          %381 = vst [vmem:[#allocation2] sm:$0xff] 0.0
          %382 = vst [vmem:[#allocation2 + $0x8] sm:$0xff] 0.0
          %383 = vst [vmem:[#allocation2 + $0x10] sm:$0xff] 0.0
          %384 = vst [vmem:[#allocation2 + $0x18] sm:$0xff] 0.0
          %385 = vst [vmem:[#allocation2 + $0x20] sm:$0xff] 0.0
          %386 = vst [vmem:[#allocation2 + $0x28] sm:$0xff] 0.0
          %387 = vst [vmem:[#allocation2 + $0x30] sm:$0xff] 0.0
          %388 = vst [vmem:[#allocation2 + $0x38] sm:$0xff] 0.0
          %389 = vst [vmem:[#allocation2 + $0x40] sm:$0xff] 0.0
          %390 = vst [vmem:[#allocation2 + $0x48] sm:$0xff] 0.0
          %391 = vst [vmem:[#allocation2 + $0x50] sm:$0xff] 0.0
          %392 = vst [vmem:[#allocation2 + $0x58] sm:$0xff] 0.0
          %393 = vst [vmem:[#allocation2 + $0x60] sm:$0xff] 0.0
          %394 = vst [vmem:[#allocation2 + $0x68] sm:$0xff] 0.0
          %395 = vst [vmem:[#allocation2 + $0x70] sm:$0xff] 0.0
          %396 = vst [vmem:[#allocation2 + $0x78] sm:$0xff] 0.0
        $region77: #{forward.3} parent=68 // pred_fallthru
          _
        %s397 = sld [smem:[#allocation4 + %s35]]
        %p398 = scmp.lt.s32.totalorder %s36, %s397
        // Predicated region
        $region78: #{forward.3} parent=68 // pred_check
          %p399 = pneg %p398
        $region79: #{forward.3} parent=68 // pred_check_branch
          %401 = sbr.rel (%p399) target = $region81
        $region80: #{forward.3} parent=68 // pred_region
          %s402 = smul.u32 %s35, 2
          %s403 = sadd.s32 %s402, %s36
          %s404 = sld [smem:[#allocation5 + %s403]]
          %s405 = smul.u32 %s404, 128
          %s406 = sshra.s32 %s405, 3
          %s407 = sand.u32 %s405, 7
          %s408 = smul.addr %s406, 4
          %s409 = scalar_lea.vmem %s3, %s408
          %v410 = vld [vmem:[%s409] sm:$0xf]
          %v411 = vld [vmem:[%s409 + $0x4] sm:$0xf]
          %v412 = vld [vmem:[%s409 + $0x8] sm:$0xf]
          %v413 = vld [vmem:[%s409 + $0xc] sm:$0xf]
          %v414 = vld [vmem:[%s409 + $0x10] sm:$0xf]
          %v415 = vld [vmem:[%s409 + $0x14] sm:$0xf]
          %v416 = vld [vmem:[%s409 + $0x18] sm:$0xf]
          %v417 = vld [vmem:[%s409 + $0x1c] sm:$0xf]
          %v418 = vld [vmem:[%s409 + $0x20] sm:$0xf]
          %v419 = vld [vmem:[%s409 + $0x24] sm:$0xf]
          %v420 = vld [vmem:[%s409 + $0x28] sm:$0xf]
          %v421 = vld [vmem:[%s409 + $0x2c] sm:$0xf]
          %v422 = vld [vmem:[%s409 + $0x30] sm:$0xf]
          %v423 = vld [vmem:[%s409 + $0x34] sm:$0xf]
          %v424 = vld [vmem:[%s409 + $0x38] sm:$0xf]
          %v425 = vld [vmem:[%s409 + $0x3c] sm:$0xf]
          %v426 = vld [vmem:[#allocation2] sm:$0xff]
          %v427 = vld [vmem:[#allocation2 + $0x8] sm:$0xff]
          %v428 = vld [vmem:[#allocation2 + $0x10] sm:$0xff]
          %v429 = vld [vmem:[#allocation2 + $0x18] sm:$0xff]
          %v430 = vld [vmem:[#allocation2 + $0x20] sm:$0xff]
          %v431 = vld [vmem:[#allocation2 + $0x28] sm:$0xff]
          %v432 = vld [vmem:[#allocation2 + $0x30] sm:$0xff]
          %v433 = vld [vmem:[#allocation2 + $0x38] sm:$0xff]
          %v434 = vld [vmem:[#allocation2 + $0x40] sm:$0xff]
          %v435 = vld [vmem:[#allocation2 + $0x48] sm:$0xff]
          %v436 = vld [vmem:[#allocation2 + $0x50] sm:$0xff]
          %v437 = vld [vmem:[#allocation2 + $0x58] sm:$0xff]
          %v438 = vld [vmem:[#allocation2 + $0x60] sm:$0xff]
          %v439 = vld [vmem:[#allocation2 + $0x68] sm:$0xff]
          %v440 = vld [vmem:[#allocation2 + $0x70] sm:$0xff]
          %v441 = vld [vmem:[#allocation2 + $0x78] sm:$0xff]
          %v442 = vld [vmem:[%s326] sm:$0xf]
          %v443 = vld [vmem:[%s326 + $0x4] sm:$0xf]
          %v444 = vld [vmem:[%s326 + $0x8] sm:$0xf]
          %v445 = vld [vmem:[%s326 + $0xc] sm:$0xf]
          %v446 = vld [vmem:[%s326 + $0x10] sm:$0xf]
          %v447 = vld [vmem:[%s326 + $0x14] sm:$0xf]
          %v448 = vld [vmem:[%s326 + $0x18] sm:$0xf]
          %v449 = vld [vmem:[%s326 + $0x1c] sm:$0xf]
          %v450 = vld [vmem:[%s326 + $0x20] sm:$0xf]
          %v451 = vld [vmem:[%s326 + $0x24] sm:$0xf]
          %v452 = vld [vmem:[%s326 + $0x28] sm:$0xf]
          %v453 = vld [vmem:[%s326 + $0x2c] sm:$0xf]
          %v454 = vld [vmem:[%s326 + $0x30] sm:$0xf]
          %v455 = vld [vmem:[%s326 + $0x34] sm:$0xf]
          %v456 = vld [vmem:[%s326 + $0x38] sm:$0xf]
          %v457 = vld [vmem:[%s326 + $0x3c] sm:$0xf]
          %v474 = vunpack.c.l.b16 %v442
          %v475 = vunpack.c.l.b16 %v443
          %v476 = vunpack.c.l.b16 %v444
          %v477 = vunpack.c.l.b16 %v445
          %v478 = vunpack.c.l.b16 %v446
          %v479 = vunpack.c.l.b16 %v447
          %v480 = vunpack.c.l.b16 %v448
          %v481 = vunpack.c.l.b16 %v449
          %v482 = vunpack.c.l.b16 %v450
          %v483 = vunpack.c.l.b16 %v451
          %v484 = vunpack.c.l.b16 %v452
          %v485 = vunpack.c.l.b16 %v453
          %v486 = vunpack.c.l.b16 %v454
          %v487 = vunpack.c.l.b16 %v455
          %v488 = vunpack.c.l.b16 %v456
          %v489 = vunpack.c.l.b16 %v457
          %v490 = vpack.c.b16 %v475, %v474
          %v491 = vpack.c.b16 %v477, %v476
          %v492 = vpack.c.b16 %v479, %v478
          %v493 = vpack.c.b16 %v481, %v480
          %v494 = vpack.c.b16 %v483, %v482
          %v495 = vpack.c.b16 %v485, %v484
          %v496 = vpack.c.b16 %v487, %v486
          %v497 = vpack.c.b16 %v489, %v488
          %v522 = vunpack.c.l.b16 %v410
          %v523 = vunpack.c.l.b16 %v411
          %v524 = vunpack.c.l.b16 %v412
          %v525 = vunpack.c.l.b16 %v413
          %v526 = vunpack.c.l.b16 %v414
          %v527 = vunpack.c.l.b16 %v415
          %v528 = vunpack.c.l.b16 %v416
          %v529 = vunpack.c.l.b16 %v417
          %v530 = vunpack.c.l.b16 %v418
          %v531 = vunpack.c.l.b16 %v419
          %v532 = vunpack.c.l.b16 %v420
          %v533 = vunpack.c.l.b16 %v421
          %v534 = vunpack.c.l.b16 %v422
          %v535 = vunpack.c.l.b16 %v423
          %v536 = vunpack.c.l.b16 %v424
          %v537 = vunpack.c.l.b16 %v425
          %v538 = vpack.c.b16 %v523, %v522
          %v539 = vpack.c.b16 %v525, %v524
          %v540 = vpack.c.b16 %v527, %v526
          %v541 = vpack.c.b16 %v529, %v528
          %v542 = vpack.c.b16 %v531, %v530
          %v543 = vpack.c.b16 %v533, %v532
          %v544 = vpack.c.b16 %v535, %v534
          %v545 = vpack.c.b16 %v537, %v536
          %554 = vmatprep.subr.bf16.mxu0 0
          %555 = vmatpush1.bf16.msra.mxu0 %v538
          %556 = vmatprep.subr.bf16.mxu0 0
          %557 = vmatpush1.bf16.msra.mxu0 %v539
          %558 = vmatprep.subr.bf16.mxu0 0
          %559 = vmatpush1.bf16.msra.mxu0 %v540
          %560 = vmatprep.subr.bf16.mxu0 0
          %561 = vmatpush1.bf16.msra.mxu0 %v541
          %562 = vmatprep.subr.bf16.mxu0 0
          %563 = vmatpush1.bf16.msra.mxu0 %v542
          %564 = vmatprep.subr.bf16.mxu0 0
          %565 = vmatpush1.bf16.msra.mxu0 %v543
          %566 = vmatprep.subr.bf16.mxu0 0
          %567 = vmatpush1.bf16.msra.mxu0 %v544
          %568 = vmatprep.subr.bf16.mxu0 0
          %569 = vmatpush1.bf16.msra.mxu0 %v545
          %570 = vmatprep.subr.bf16.mxu0 0
          %571 = vmatpush1.bf16.msra.mxu0 0
          %572 = vmatprep.subr.bf16.mxu0 0
          %573 = vmatpush1.bf16.msra.mxu0 0
          %574 = vmatprep.subr.bf16.mxu0 0
          %575 = vmatpush1.bf16.msra.mxu0 0
          %576 = vmatprep.subr.bf16.mxu0 0
          %577 = vmatpush1.bf16.msra.mxu0 0
          %578 = vmatprep.subr.bf16.mxu0 0
          %579 = vmatpush1.bf16.msra.mxu0 0
          %580 = vmatprep.subr.bf16.mxu0 0
          %581 = vmatpush1.bf16.msra.mxu0 0
          %582 = vmatprep.subr.bf16.mxu0 0
          %583 = vmatpush1.bf16.msra.mxu0 0
          %584 = vmatprep.subr.bf16.mxu0 0
          %585 = vmatpush1.bf16.msra.mxu0 0
          %586 = vmatprep.mubr.bf16.mxu0 0
          %587 = vmatmul.mubr.bf16.gmra.mrb[0].mxu0 %v490
          %v588 = vpop.f32.mrb[0].mxu0
          %v589 = vadd.f32 0.0, %v588
          %v590 = vpop.f32.mrb[0].mxu0
          %v591 = vpop.f32.mrb[0].mxu0
          %v592 = vadd.f32 0.0, %v591
          %v593 = vpop.f32.mrb[0].mxu0
          %594 = vmatprep.mubr.bf16.mxu0 0
          %595 = vmatmul.mubr.bf16.gmra.mrb[0].mxu0 %v491
          %v596 = vpop.f32.mrb[0].mxu0
          %v597 = vadd.f32 0.0, %v596
          %v598 = vpop.f32.mrb[0].mxu0
          %v599 = vpop.f32.mrb[0].mxu0
          %v600 = vadd.f32 0.0, %v599
          %v601 = vpop.f32.mrb[0].mxu0
          %602 = vmatprep.mubr.bf16.mxu0 0
          %603 = vmatmul.mubr.bf16.gmra.mrb[0].mxu0 %v492
          %v604 = vpop.f32.mrb[0].mxu0
          %v605 = vadd.f32 0.0, %v604
          %v606 = vpop.f32.mrb[0].mxu0
          %v607 = vpop.f32.mrb[0].mxu0
          %v608 = vadd.f32 0.0, %v607
          %v609 = vpop.f32.mrb[0].mxu0
          %610 = vmatprep.mubr.bf16.mxu0 0
          %611 = vmatmul.mubr.bf16.gmra.mrb[0].mxu0 %v493
          %v612 = vpop.f32.mrb[0].mxu0
          %v613 = vadd.f32 0.0, %v612
          %v614 = vpop.f32.mrb[0].mxu0
          %v615 = vpop.f32.mrb[0].mxu0
          %v616 = vadd.f32 0.0, %v615
          %v617 = vpop.f32.mrb[0].mxu0
          %618 = vmatprep.mubr.bf16.mxu0 0
          %619 = vmatmul.mubr.bf16.gmra.mrb[0].mxu0 %v494
          %v620 = vpop.f32.mrb[0].mxu0
          %v621 = vadd.f32 0.0, %v620
          %v622 = vpop.f32.mrb[0].mxu0
          %v623 = vpop.f32.mrb[0].mxu0
          %v624 = vadd.f32 0.0, %v623
          %v625 = vpop.f32.mrb[0].mxu0
          %626 = vmatprep.mubr.bf16.mxu0 0
          %627 = vmatmul.mubr.bf16.gmra.mrb[0].mxu0 %v495
          %v628 = vpop.f32.mrb[0].mxu0
          %v629 = vadd.f32 0.0, %v628
          %v630 = vpop.f32.mrb[0].mxu0
          %v631 = vpop.f32.mrb[0].mxu0
          %v632 = vadd.f32 0.0, %v631
          %v633 = vpop.f32.mrb[0].mxu0
          %634 = vmatprep.mubr.bf16.mxu0 0
          %635 = vmatmul.mubr.bf16.gmra.mrb[0].mxu0 %v496
          %v636 = vpop.f32.mrb[0].mxu0
          %v637 = vadd.f32 0.0, %v636
          %v638 = vpop.f32.mrb[0].mxu0
          %v639 = vpop.f32.mrb[0].mxu0
          %v640 = vadd.f32 0.0, %v639
          %v641 = vpop.f32.mrb[0].mxu0
          %642 = vmatprep.mubr.bf16.mxu0 0
          %643 = vmatmul.mubr.bf16.gmra.mrb[0].mxu0 %v497
          %v644 = vpop.f32.mrb[0].mxu0
          %v645 = vadd.f32 0.0, %v644
          %v646 = vpop.f32.mrb[0].mxu0
          %v647 = vpop.f32.mrb[0].mxu0
          %v648 = vadd.f32 0.0, %v647
          %v649 = vpop.f32.mrb[0].mxu0
          %650 = vdwg.mxu0
          %v651 = vadd.f32 %v426, %v589
          %v652 = vadd.f32 %v427, %v592
          %v653 = vadd.f32 %v428, %v597
          %v654 = vadd.f32 %v429, %v600
          %v655 = vadd.f32 %v430, %v605
          %v656 = vadd.f32 %v431, %v608
          %v657 = vadd.f32 %v432, %v613
          %v658 = vadd.f32 %v433, %v616
          %v659 = vadd.f32 %v434, %v621
          %v660 = vadd.f32 %v435, %v624
          %v661 = vadd.f32 %v436, %v629
          %v662 = vadd.f32 %v437, %v632
          %v663 = vadd.f32 %v438, %v637
          %v664 = vadd.f32 %v439, %v640
          %v665 = vadd.f32 %v440, %v645
          %v666 = vadd.f32 %v441, %v648
          %667 = vst [vmem:[#allocation2] sm:$0xff] %v651
          %668 = vst [vmem:[#allocation2 + $0x8] sm:$0xff] %v652
          %669 = vst [vmem:[#allocation2 + $0x10] sm:$0xff] %v653
          %670 = vst [vmem:[#allocation2 + $0x18] sm:$0xff] %v654
          %671 = vst [vmem:[#allocation2 + $0x20] sm:$0xff] %v655
          %672 = vst [vmem:[#allocation2 + $0x28] sm:$0xff] %v656
          %673 = vst [vmem:[#allocation2 + $0x30] sm:$0xff] %v657
          %674 = vst [vmem:[#allocation2 + $0x38] sm:$0xff] %v658
          %675 = vst [vmem:[#allocation2 + $0x40] sm:$0xff] %v659
          %676 = vst [vmem:[#allocation2 + $0x48] sm:$0xff] %v660
          %677 = vst [vmem:[#allocation2 + $0x50] sm:$0xff] %v661
          %678 = vst [vmem:[#allocation2 + $0x58] sm:$0xff] %v662
          %679 = vst [vmem:[#allocation2 + $0x60] sm:$0xff] %v663
          %680 = vst [vmem:[#allocation2 + $0x68] sm:$0xff] %v664
          %681 = vst [vmem:[#allocation2 + $0x70] sm:$0xff] %v665
          %682 = vst [vmem:[#allocation2 + $0x78] sm:$0xff] %v666
        $region81: #{forward.3} parent=68 // pred_fallthru
          _
        %p683 = scmp.eq.s32.totalorder %s36, 1
        // Predicated region
        $region82: #{forward.3} parent=68 // pred_check
          %p684 = pneg %p683
        $region83: #{forward.3} parent=68 // pred_check_branch
          %686 = sbr.rel (%p684) target = $region85
        $region84: #{forward.3} parent=68 // pred_region
          %v687 = vld [vmem:[#allocation2] sm:$0xff]
          %v688 = vld [vmem:[#allocation2 + $0x8] sm:$0xff]
          %v689 = vld [vmem:[#allocation2 + $0x10] sm:$0xff]
          %v690 = vld [vmem:[#allocation2 + $0x18] sm:$0xff]
          %v691 = vld [vmem:[#allocation2 + $0x20] sm:$0xff]
          %v692 = vld [vmem:[#allocation2 + $0x28] sm:$0xff]
          %v693 = vld [vmem:[#allocation2 + $0x30] sm:$0xff]
          %v694 = vld [vmem:[#allocation2 + $0x38] sm:$0xff]
          %v695 = vld [vmem:[#allocation2 + $0x40] sm:$0xff]
          %v696 = vld [vmem:[#allocation2 + $0x48] sm:$0xff]
          %v697 = vld [vmem:[#allocation2 + $0x50] sm:$0xff]
          %v698 = vld [vmem:[#allocation2 + $0x58] sm:$0xff]
          %v699 = vld [vmem:[#allocation2 + $0x60] sm:$0xff]
          %v700 = vld [vmem:[#allocation2 + $0x68] sm:$0xff]
          %v701 = vld [vmem:[#allocation2 + $0x70] sm:$0xff]
          %v702 = vld [vmem:[#allocation2 + $0x78] sm:$0xff]
          %v703 = vld [vmem:[%s367] sm:$0xff]
          %v704 = vld [vmem:[%s367 + $0x8] sm:$0xff]
          %v705 = vld [vmem:[%s367 + $0x10] sm:$0xff]
          %v706 = vld [vmem:[%s367 + $0x18] sm:$0xff]
          %v707 = vld [vmem:[%s367 + $0x20] sm:$0xff]
          %v708 = vld [vmem:[%s367 + $0x28] sm:$0xff]
          %v709 = vld [vmem:[%s367 + $0x30] sm:$0xff]
          %v710 = vld [vmem:[%s367 + $0x38] sm:$0xff]
          %v711 = vld [vmem:[%s367 + $0x40] sm:$0xff]
          %v712 = vld [vmem:[%s367 + $0x48] sm:$0xff]
          %v713 = vld [vmem:[%s367 + $0x50] sm:$0xff]
          %v714 = vld [vmem:[%s367 + $0x58] sm:$0xff]
          %v715 = vld [vmem:[%s367 + $0x60] sm:$0xff]
          %v716 = vld [vmem:[%s367 + $0x68] sm:$0xff]
          %v717 = vld [vmem:[%s367 + $0x70] sm:$0xff]
          %v718 = vld [vmem:[%s367 + $0x78] sm:$0xff]
          %v719 = vadd.f32 %v703, %v687
          %v720 = vadd.f32 %v704, %v688
          %v721 = vadd.f32 %v705, %v689
          %v722 = vadd.f32 %v706, %v690
          %v723 = vadd.f32 %v707, %v691
          %v724 = vadd.f32 %v708, %v692
          %v725 = vadd.f32 %v709, %v693
          %v726 = vadd.f32 %v710, %v694
          %v727 = vadd.f32 %v711, %v695
          %v728 = vadd.f32 %v712, %v696
          %v729 = vadd.f32 %v713, %v697
          %v730 = vadd.f32 %v714, %v698
          %v731 = vadd.f32 %v715, %v699
          %v732 = vadd.f32 %v716, %v700
          %v733 = vadd.f32 %v717, %v701
          %v734 = vadd.f32 %v718, %v702
          %735 = vst [vmem:[%s373] sm:$0xff] %v719
          %736 = vst [vmem:[%s373 + $0x8] sm:$0xff] %v720
          %737 = vst [vmem:[%s373 + $0x10] sm:$0xff] %v721
          %738 = vst [vmem:[%s373 + $0x18] sm:$0xff] %v722
          %739 = vst [vmem:[%s373 + $0x20] sm:$0xff] %v723
          %740 = vst [vmem:[%s373 + $0x28] sm:$0xff] %v724
          %741 = vst [vmem:[%s373 + $0x30] sm:$0xff] %v725
          %742 = vst [vmem:[%s373 + $0x38] sm:$0xff] %v726
          %743 = vst [vmem:[%s373 + $0x40] sm:$0xff] %v727
          %744 = vst [vmem:[%s373 + $0x48] sm:$0xff] %v728
          %745 = vst [vmem:[%s373 + $0x50] sm:$0xff] %v729
          %746 = vst [vmem:[%s373 + $0x58] sm:$0xff] %v730
          %747 = vst [vmem:[%s373 + $0x60] sm:$0xff] %v731
          %748 = vst [vmem:[%s373 + $0x68] sm:$0xff] %v732
          %749 = vst [vmem:[%s373 + $0x70] sm:$0xff] %v733
          %750 = vst [vmem:[%s373 + $0x78] sm:$0xff] %v734
          %v751 = vpack.c.bf16 %v688, %v687
          %v752 = vpack.c.bf16 %v690, %v689
          %v753 = vpack.c.bf16 %v692, %v691
          %v754 = vpack.c.bf16 %v694, %v693
          %v755 = vpack.c.bf16 %v696, %v695
          %v756 = vpack.c.bf16 %v698, %v697
          %v757 = vpack.c.bf16 %v700, %v699
          %v758 = vpack.c.bf16 %v702, %v701
          %v767 = vunpack.c.l.b16 %v751
          %v768 = vunpack.c.h.b16 %v751
          %v769 = vunpack.c.l.b16 %v752
          %v770 = vunpack.c.h.b16 %v752
          %v771 = vunpack.c.l.b16 %v753
          %v772 = vunpack.c.h.b16 %v753
          %v773 = vunpack.c.l.b16 %v754
          %v774 = vunpack.c.h.b16 %v754
          %v775 = vunpack.c.l.b16 %v755
          %v776 = vunpack.c.h.b16 %v755
          %v777 = vunpack.c.l.b16 %v756
          %v778 = vunpack.c.h.b16 %v756
          %v779 = vunpack.c.l.b16 %v757
          %v780 = vunpack.c.h.b16 %v757
          %v781 = vunpack.c.l.b16 %v758
          %v782 = vunpack.c.h.b16 %v758
          %v783 = vpack.c.b16 %v767, %v767
          %v784 = vpack.c.b16 %v768, %v768
          %v785 = vpack.c.b16 %v769, %v769
          %v786 = vpack.c.b16 %v770, %v770
          %v787 = vpack.c.b16 %v771, %v771
          %v788 = vpack.c.b16 %v772, %v772
          %v789 = vpack.c.b16 %v773, %v773
          %v790 = vpack.c.b16 %v774, %v774
          %v791 = vpack.c.b16 %v775, %v775
          %v792 = vpack.c.b16 %v776, %v776
          %v793 = vpack.c.b16 %v777, %v777
          %v794 = vpack.c.b16 %v778, %v778
          %v795 = vpack.c.b16 %v779, %v779
          %v796 = vpack.c.b16 %v780, %v780
          %v797 = vpack.c.b16 %v781, %v781
          %v798 = vpack.c.b16 %v782, %v782
          %815 = vst [vmem:[%s358] sm:$0xf] %v783
          %816 = vst [vmem:[%s358 + $0x4] sm:$0xf] %v784
          %817 = vst [vmem:[%s358 + $0x8] sm:$0xf] %v785
          %818 = vst [vmem:[%s358 + $0xc] sm:$0xf] %v786
          %819 = vst [vmem:[%s358 + $0x10] sm:$0xf] %v787
          %820 = vst [vmem:[%s358 + $0x14] sm:$0xf] %v788
          %821 = vst [vmem:[%s358 + $0x18] sm:$0xf] %v789
          %822 = vst [vmem:[%s358 + $0x1c] sm:$0xf] %v790
          %823 = vst [vmem:[%s358 + $0x20] sm:$0xf] %v791
          %824 = vst [vmem:[%s358 + $0x24] sm:$0xf] %v792
          %825 = vst [vmem:[%s358 + $0x28] sm:$0xf] %v793
          %826 = vst [vmem:[%s358 + $0x2c] sm:$0xf] %v794
          %827 = vst [vmem:[%s358 + $0x30] sm:$0xf] %v795
          %828 = vst [vmem:[%s358 + $0x34] sm:$0xf] %v796
          %829 = vst [vmem:[%s358 + $0x38] sm:$0xf] %v797
          %830 = vst [vmem:[%s358 + $0x3c] sm:$0xf] %v798
        $region85: #{forward.3} parent=68 // pred_fallthru
          _
        %s831 = smul.u32 16, %s35
        %p832 = scmp.lt.s32.totalorder %s831, 31
        %s833 = scalar_select %p832, %s831, 31
        %s834 = smul.addr %s833, 8
        %s835 = scalar_lea.vmem %s5, %s834
        %s836 = sand.u32 %s158, 1
        %s837 = scalar_lea.sflag [#allocation8], %s836
        %s838 = sand.u32 %s158, 1
        %s839 = smul.addr %s838, 64
        %s840 = scalar_lea.vmem [#allocation7], %s839
        // Predicated region
        $region86: #{forward.3} parent=68 // pred_check
          %p841 = pneg %p142
        $region87: #{forward.3} parent=68 // pred_check_branch
          %843 = sbr.rel (%p841) target = $region89
        $region88: #{forward.3} parent=68 // pred_region
          %s844 = smul.u32 16, %s35
        $region89: #{forward.3} parent=68 // pred_fallthru
          _
        // Predicated region
        $region90: #{forward.3} parent=68 // pred_check
          %p845 = pneg %p168
        $region91: #{forward.3} parent=68 // pred_check_branch
          %847 = sbr.rel (%p845) target = $region93
        $region92: #{forward.3} parent=68 // pred_region
          %s848 = smul.u32 16, %s35
          %s850 = ssub.s32 1024, 1024
          %851 = vsyncadd %s837, %s850
          %s852 = smul.addr %s848, 64
          %s853 = scalar_lea.hbm %s6, %s852
          %s854 = sshll.u32 %s840, 4
          %s855 = int_to_ptr.vmem [resolvable:$true] %s854
          %860 = dma.vmem_to_hbm [thread:$0]  %s855, 1024, %s853, %s837, 64, 64, 4
        $region93: #{forward.3} parent=68 // pred_fallthru
          _
      $region69: #{forward.3} parent=5 // pred_fallthru
        _
      %p861 = scmp.le.s32.totalorder 2, %s26
      // Predicated region
      $region94: #{forward.3} parent=5 // pred_check
        %p862 = pneg %p861
      $region95: #{forward.3} parent=5 // pred_check_branch
        %864 = sbr.rel (%p862) target = $region97
      $region96: #{forward.3} parent=5 // pred_region
        %s865 = ssub.s32 %s26, 2
        // Predicated region
        $region98: #{forward.3} parent=96 // pred_check
          %p866 = pneg %p148
        $region99: #{forward.3} parent=96 // pred_check_branch
          %868 = sbr.rel (%p866) target = $region101
        $region100: #{forward.3} parent=96 // pred_region
          %s869 = smul.u32 16, %s37
          %p870 = scmp.lt.s32.totalorder %s869, 31
          %s871 = scalar_select %p870, %s869, 31
          %s872 = smul.addr %s871, 8
          %s873 = scalar_lea.vmem %s5, %s872
        $region101: #{forward.3} parent=96 // pred_fallthru
          _
        // Predicated region
        $region102: #{forward.3} parent=96 // pred_check
          %p874 = pneg %p174
        $region103: #{forward.3} parent=96 // pred_check_branch
          %876 = sbr.rel (%p874) target = $region105
        $region104: #{forward.3} parent=96 // pred_region
          %s877 = sand.u32 %s159, 1
          %s878 = scalar_lea.sflag [#allocation8], %s877
          %s879 = sand.u32 %s159, 1
          %s880 = smul.addr %s879, 64
          %s881 = scalar_lea.vmem [#allocation7], %s880
          %882 = dma.done %s878, 1024
        $region105: #{forward.3} parent=96 // pred_fallthru
          _
      $region97: #{forward.3} parent=5 // pred_fallthru
        _
    $region6: #{forward.3} parent=1 // loop_footer
      %s30 = sadd.s32 1, %s26
    $region7: #{forward.3} parent=1 // loop_footer_branch
      %25 = sbr.rel target = $region3
    $region8: #{forward.3} parent=1 // loop_exit
      _
    %883 = vsyncpa [#allocation8], 1
    %s884 = scalar_lea.sflag [#allocation8], 1
    %885 = vsyncpa %s884, 1

</llo_original>
